<compile_context>
chip_gen: v7x
topology: tpu7x:2x2x1
jax: 0.10.0
libtpu: 0.0.40
codegen_flags: <defaults>
</compile_context>

<pallas_src>
import jax
import jax.numpy as jnp
from jax.experimental import pallas as pl
from jax.experimental.pallas import tpu as pltpu

EPS = 1e-5
LANE = 128  # lane width: all feature dims padded to a multiple of this


def mlp_kernel(x_ref, w1, b1, w2, b2, w3, b3, w4, b4, out_ref):
    def layer(h_bf16, w_ref, b_ref, relu):
        # MXU matmul in bf16 with f32 accumulation; epilogue (bias, ReLU) in f32.
        z = jnp.dot(h_bf16, w_ref[...], preferred_element_type=jnp.float32)
        z = z + b_ref[...]
        if relu:
            z = jnp.maximum(z, 0.0)
        return z

    h = layer(x_ref[...], w1, b1, True)                 # x already bf16 (no cast)
    h = layer(h.astype(jnp.bfloat16), w2, b2, True)     # BN1 folded into W2
    h = layer(h.astype(jnp.bfloat16), w3, b3, True)     # BN2 folded into W3
    # output Linear' (BN3 folded), lane-padded to 128; store bf16 (halved writeback).
    out_ref[...] = layer(h.astype(jnp.bfloat16), w4, b4, False).astype(out_ref.dtype)


def neural_net_forward(x, folded_params, num_classes, tile_b=128):
    """x: (B, input_size) f32/bf16. folded_params: [W1,b1,...,W4,b4] from fold_params()."""
    B, D = x.shape
    # Even number of grid steps (>= 2) so dimension_semantics=("parallel",) can shard
    # the batch across both TensorCores on v7x; 2 steps total here (~0.7 us overhead
    # on single-TC v5e/v6e, negligible).
    Bp = pl.cdiv(B, 2 * tile_b) * (2 * tile_b)
    x = x.astype(jnp.bfloat16)          # bf16 activation stream: halves input DMA
    if Bp != B:
        x = jnp.pad(x, ((0, Bp - B), (0, 0)))
    n_out_pad = folded_params[-1].shape[-1]

    in_specs = [pl.BlockSpec((tile_b, D), lambda i: (i, 0))]
    for p in folded_params:
        # Full-array block, constant index map -> weights/biases stay VMEM-resident
        # across grid steps (the redundant double-buffer bookkeeping is ~160 KB, free).
        in_specs.append(pl.BlockSpec(p.shape, lambda i: (0, 0)))

    out = pl.pallas_call(
        mlp_kernel,
        out_shape=jax.ShapeDtypeStruct((Bp, n_out_pad), jnp.bfloat16),
        grid=(Bp // tile_b,),
        in_specs=in_specs,
        out_specs=pl.BlockSpec((tile_b, n_out_pad), lambda i: (i, 0)),
        compiler_params=pltpu.CompilerParams(dimension_semantics=("parallel",)),
    )(x, *folded_params)
    return out[:B, :num_classes]


def init_raw_params(key, input_size, hidden_sizes=(256, 128, 64), num_classes=3):
    """Deterministic synthetic parameters matching the PyTorch module's shapes.
    Linear weights stored as (in, out) == W_pt.T."""
    params = []
    last = input_size
    for h in hidden_sizes:
        key, kw, kb, kg, kbt, km, kv = jax.random.split(key, 7)
        params.append(jax.random.normal(kw, (last, h), jnp.float32) * 0.05)    # W
        params.append(jax.random.normal(kb, (h,), jnp.float32) * 0.05)         # bias
        params.append(1.0 + 0.1 * jax.random.normal(kg, (h,), jnp.float32))    # BN gamma
        params.append(0.1 * jax.random.normal(kbt, (h,), jnp.float32))         # BN beta
        params.append(0.1 * jax.random.normal(km, (h,), jnp.float32))          # BN running_mean
        params.append(1.0 + 0.1 * jax.random.uniform(kv, (h,), jnp.float32))   # BN running_var
        last = h
    key, kw, kb = jax.random.split(key, 3)
    params.append(jax.random.normal(kw, (last, num_classes), jnp.float32) * 0.05)
    params.append(jax.random.normal(kb, (num_classes,), jnp.float32) * 0.05)
    return params


def fold_params(raw_params, lane=LANE):
    """Fold eval-mode BN_i into Linear_{i+1} (in f32); zero-pad every layer's output
    width to a multiple of `lane` (and the next layer's input rows to match); cast
    weights to bf16 (biases stay f32, shaped (1, out))."""
    n_hidden = (len(raw_params) - 2) // 6
    lin_w = [raw_params[6 * i] for i in range(n_hidden)] + [raw_params[-2]]
    lin_b = [raw_params[6 * i + 1] for i in range(n_hidden)] + [raw_params[-1]]
    bn = [tuple(raw_params[6 * i + 2: 6 * i + 6]) for i in range(n_hidden)]

    folded = []
    w, b = lin_w[0], lin_b[0]
    for i in range(n_hidden):
        folded.append([w, b])
        g, bt, m, v = bn[i]
        scale = g * jax.lax.rsqrt(v + EPS)       # BN(y) = scale*y + shift
        shift = bt - m * scale
        w_next, b_next = lin_w[i + 1], lin_b[i + 1]
        w = scale[:, None] * w_next              # fold BN into next Linear
        b = shift @ w_next + b_next
    folded.append([w, b])

    # Lane-pad: zero extra output columns + zero bias entries, and zero the matching
    # input rows of the next layer.  Identity through ReLU -> results unchanged, but
    # all vregs are lane-dense and every MXU pass is full-width (fixes the 64-wide
    # hidden layer and the 3-wide output).
    for i in range(len(folded)):
        w_i, b_i = folded[i]
        n_out = w_i.shape[1]
        n_pad = pl.cdiv(n_out, lane) * lane
        if n_pad != n_out:
            folded[i][0] = jnp.pad(w_i, ((0, 0), (0, n_pad - n_out)))
            folded[i][1] = jnp.pad(b_i, ((0, n_pad - n_out),))
            if i + 1 < len(folded):
                folded[i + 1][0] = jnp.pad(folded[i + 1][0],
                                           ((0, n_pad - n_out), (0, 0)))

    out = []
    for w, b in folded:
        out.append(w.astype(jnp.bfloat16))                  # MXU operands in bf16
        out.append(b.reshape(1, -1).astype(jnp.float32))    # f32 epilogue (no bf16 VALU on v5e)
    return out


def reference_forward(x, raw_params):
    """Pure-JAX f32 reference of the eval-mode PyTorch forward (unfolded BN)."""
    h = x
    n_hidden = (len(raw_params) - 2) // 6
    for i in range(n_hidden):
        w, b, g, bt, m, v = raw_params[6 * i: 6 * i + 6]
        h = jnp.maximum(h @ w + b, 0.0)
        h = (h - m) * jax.lax.rsqrt(v + EPS) * g + bt
    return h @ raw_params[-2] + raw_params[-1]


if __name__ == "__main__":
    key = jax.random.PRNGKey(0)
    key, kx = jax.random.split(key)

    batch, input_size, num_classes = 200, 128, 3   # batch not a multiple of 128: exercises padding
    x = jax.random.normal(kx, (batch, input_size), jnp.float32)

    raw_params = init_raw_params(key, input_size, hidden_sizes=(256, 128, 64),
                                 num_classes=num_classes)
    folded = fold_params(raw_params)

    out = neural_net_forward(x, folded, num_classes, tile_b=128)
    out = jax.block_until_ready(out)

    ref = reference_forward(x, raw_params)
    assert out.shape == (batch, num_classes)
    # bf16 matmul operands + bf16 output + f32 accumulation -> loosened tolerance vs f32 reference.
    assert jnp.allclose(out.astype(jnp.float32), ref, atol=3e-2, rtol=3e-2), "mismatch vs reference"

    print("KERNEL_OK")
</pallas_src>

<mosaic_0001>
module attributes {stable_mosaic.version = 11 : i64} {
  func.func @mlp_kernel(%arg0: i32, %arg1: memref<128x128xbf16, #tpu.memory_space<vmem>>, %arg2: memref<128x256xbf16, #tpu.memory_space<vmem>>, %arg3: memref<1x256xf32, #tpu.memory_space<vmem>>, %arg4: memref<256x128xbf16, #tpu.memory_space<vmem>>, %arg5: memref<1x128xf32, #tpu.memory_space<vmem>>, %arg6: memref<128x128xbf16, #tpu.memory_space<vmem>>, %arg7: memref<1x128xf32, #tpu.memory_space<vmem>>, %arg8: memref<128x128xbf16, #tpu.memory_space<vmem>>, %arg9: memref<1x128xf32, #tpu.memory_space<vmem>>, %arg10: memref<128x128xbf16, #tpu.memory_space<vmem>>) attributes {dimension_semantics = [#tpu.dimension_semantics<parallel>], iteration_bounds = array<i64: 2>, scalar_prefetch = 0 : i64, scratch_operands = 0 : i64, tpu.core_type = #tpu.core_type<tc>, window_params = [{transform_indices = @transform_0, window_bounds = array<i64: 128, 128>}, {pipeline_mode = #tpu.pipeline_mode<synchronous>, transform_indices = @transform_1, window_bounds = array<i64: 128, 256>}, {pipeline_mode = #tpu.pipeline_mode<synchronous>, transform_indices = @transform_2, window_bounds = array<i64: 1, 256>}, {pipeline_mode = #tpu.pipeline_mode<synchronous>, transform_indices = @transform_3, window_bounds = array<i64: 256, 128>}, {pipeline_mode = #tpu.pipeline_mode<synchronous>, transform_indices = @transform_4, window_bounds = array<i64: 1, 128>}, {pipeline_mode = #tpu.pipeline_mode<synchronous>, transform_indices = @transform_5, window_bounds = array<i64: 128, 128>}, {pipeline_mode = #tpu.pipeline_mode<synchronous>, transform_indices = @transform_6, window_bounds = array<i64: 1, 128>}, {pipeline_mode = #tpu.pipeline_mode<synchronous>, transform_indices = @transform_7, window_bounds = array<i64: 128, 128>}, {pipeline_mode = #tpu.pipeline_mode<synchronous>, transform_indices = @transform_8, window_bounds = array<i64: 1, 128>}, {transform_indices = @transform_9, window_bounds = array<i64: 128, 128>}]} {
    %c0 = arith.constant 0 : index
    %c0_0 = arith.constant 0 : index
    %0 = vector.load %arg1[%c0, %c0_0] : memref<128x128xbf16, #tpu.memory_space<vmem>>, vector<128x128xbf16>
    %c0_1 = arith.constant 0 : index
    %c0_2 = arith.constant 0 : index
    %1 = vector.load %arg2[%c0_1, %c0_2] : memref<128x256xbf16, #tpu.memory_space<vmem>>, vector<128x256xbf16>
    %cst = arith.constant dense<0.000000e+00> : vector<128x256xf32>
    %2 = tpu.matmul %0, %1, %cst {dimension_numbers = #tpu.dot_dimension_numbers<[1], [0], [0], [1], [0, 0, 1, 1], [], []>} : vector<128x128xbf16>, vector<128x256xbf16>, vector<128x256xf32> -> vector<128x256xf32>
    %c0_3 = arith.constant 0 : index
    %c0_4 = arith.constant 0 : index
    %3 = vector.load %arg3[%c0_3, %c0_4] : memref<1x256xf32, #tpu.memory_space<vmem>>, vector<1x256xf32>
    %4 = vector.broadcast %3 : vector<1x256xf32> to vector<128x256xf32>
    %5 = arith.addf %2, %4 : vector<128x256xf32>
    %cst_5 = arith.constant 0.000000e+00 : f32
    %6 = vector.broadcast %cst_5 : f32 to vector<128x256xf32>
    %7 = arith.maximumf %5, %6 : vector<128x256xf32>
    %8 = arith.truncf %7 : vector<128x256xf32> to vector<128x256xbf16>
    %c0_6 = arith.constant 0 : index
    %c0_7 = arith.constant 0 : index
    %9 = vector.load %arg4[%c0_6, %c0_7] : memref<256x128xbf16, #tpu.memory_space<vmem>>, vector<256x128xbf16>
    %cst_8 = arith.constant dense<0.000000e+00> : vector<128x128xf32>
    %10 = tpu.matmul %8, %9, %cst_8 {dimension_numbers = #tpu.dot_dimension_numbers<[1], [0], [0], [1], [0, 0, 1, 1], [], []>} : vector<128x256xbf16>, vector<256x128xbf16>, vector<128x128xf32> -> vector<128x128xf32>
    %c0_9 = arith.constant 0 : index
    %c0_10 = arith.constant 0 : index
    %11 = vector.load %arg5[%c0_9, %c0_10] : memref<1x128xf32, #tpu.memory_space<vmem>>, vector<1x128xf32>
    %12 = vector.broadcast %11 : vector<1x128xf32> to vector<128x128xf32>
    %13 = arith.addf %10, %12 : vector<128x128xf32>
    %cst_11 = arith.constant 0.000000e+00 : f32
    %14 = vector.broadcast %cst_11 : f32 to vector<128x128xf32>
    %15 = arith.maximumf %13, %14 : vector<128x128xf32>
    %16 = arith.truncf %15 : vector<128x128xf32> to vector<128x128xbf16>
    %c0_12 = arith.constant 0 : index
    %c0_13 = arith.constant 0 : index
    %17 = vector.load %arg6[%c0_12, %c0_13] : memref<128x128xbf16, #tpu.memory_space<vmem>>, vector<128x128xbf16>
    %cst_14 = arith.constant dense<0.000000e+00> : vector<128x128xf32>
    %18 = tpu.matmul %16, %17, %cst_14 {dimension_numbers = #tpu.dot_dimension_numbers<[1], [0], [0], [1], [0, 0, 1, 1], [], []>} : vector<128x128xbf16>, vector<128x128xbf16>, vector<128x128xf32> -> vector<128x128xf32>
    %c0_15 = arith.constant 0 : index
    %c0_16 = arith.constant 0 : index
    %19 = vector.load %arg7[%c0_15, %c0_16] : memref<1x128xf32, #tpu.memory_space<vmem>>, vector<1x128xf32>
    %20 = vector.broadcast %19 : vector<1x128xf32> to vector<128x128xf32>
    %21 = arith.addf %18, %20 : vector<128x128xf32>
    %cst_17 = arith.constant 0.000000e+00 : f32
    %22 = vector.broadcast %cst_17 : f32 to vector<128x128xf32>
    %23 = arith.maximumf %21, %22 : vector<128x128xf32>
    %24 = arith.truncf %23 : vector<128x128xf32> to vector<128x128xbf16>
    %c0_18 = arith.constant 0 : index
    %c0_19 = arith.constant 0 : index
    %25 = vector.load %arg8[%c0_18, %c0_19] : memref<128x128xbf16, #tpu.memory_space<vmem>>, vector<128x128xbf16>
    %cst_20 = arith.constant dense<0.000000e+00> : vector<128x128xf32>
    %26 = tpu.matmul %24, %25, %cst_20 {dimension_numbers = #tpu.dot_dimension_numbers<[1], [0], [0], [1], [0, 0, 1, 1], [], []>} : vector<128x128xbf16>, vector<128x128xbf16>, vector<128x128xf32> -> vector<128x128xf32>
    %c0_21 = arith.constant 0 : index
    %c0_22 = arith.constant 0 : index
    %27 = vector.load %arg9[%c0_21, %c0_22] : memref<1x128xf32, #tpu.memory_space<vmem>>, vector<1x128xf32>
    %28 = vector.broadcast %27 : vector<1x128xf32> to vector<128x128xf32>
    %29 = arith.addf %26, %28 : vector<128x128xf32>
    %30 = arith.truncf %29 : vector<128x128xf32> to vector<128x128xbf16>
    %c0_23 = arith.constant 0 : index
    %c0_24 = arith.constant 0 : index
    %31 = vector.load %arg10[%c0_23, %c0_24] : memref<128x128xbf16, #tpu.memory_space<vmem>>, vector<128x128xbf16>
    tpu.vector_store %arg10[%c0_23, %c0_24], %30 {strides = array<i32>} : memref<128x128xbf16, #tpu.memory_space<vmem>>, vector<128x128xbf16>,
    return
  }
  func.func @transform_0(%arg0: i32) -> (i32, i32) {
    %c0_i32 = arith.constant 0 : i32
    %c0_i32_0 = arith.constant 0 : i32
    return %arg0, %c0_i32 : i32, i32
  }
  func.func @transform_1(%arg0: i32) -> (i32, i32) {
    %c0_i32 = arith.constant 0 : i32
    %c0_i32_0 = arith.constant 0 : i32
    %c0_i32_1 = arith.constant 0 : i32
    return %c0_i32, %c0_i32_0 : i32, i32
  }
  func.func @transform_2(%arg0: i32) -> (i32, i32) {
    %c0_i32 = arith.constant 0 : i32
    %c0_i32_0 = arith.constant 0 : i32
    %c0_i32_1 = arith.constant 0 : i32
    return %c0_i32, %c0_i32_0 : i32, i32
  }
  func.func @transform_3(%arg0: i32) -> (i32, i32) {
    %c0_i32 = arith.constant 0 : i32
    %c0_i32_0 = arith.constant 0 : i32
    %c0_i32_1 = arith.constant 0 : i32
    return %c0_i32, %c0_i32_0 : i32, i32
  }
  func.func @transform_4(%arg0: i32) -> (i32, i32) {
    %c0_i32 = arith.constant 0 : i32
    %c0_i32_0 = arith.constant 0 : i32
    %c0_i32_1 = arith.constant 0 : i32
    return %c0_i32, %c0_i32_0 : i32, i32
  }
  func.func @transform_5(%arg0: i32) -> (i32, i32) {
    %c0_i32 = arith.constant 0 : i32
    %c0_i32_0 = arith.constant 0 : i32
    %c0_i32_1 = arith.constant 0 : i32
    return %c0_i32, %c0_i32_0 : i32, i32
  }
  func.func @transform_6(%arg0: i32) -> (i32, i32) {
    %c0_i32 = arith.constant 0 : i32
    %c0_i32_0 = arith.constant 0 : i32
    %c0_i32_1 = arith.constant 0 : i32
    return %c0_i32, %c0_i32_0 : i32, i32
  }
  func.func @transform_7(%arg0: i32) -> (i32, i32) {
    %c0_i32 = arith.constant 0 : i32
    %c0_i32_0 = arith.constant 0 : i32
    %c0_i32_1 = arith.constant 0 : i32
    return %c0_i32, %c0_i32_0 : i32, i32
  }
  func.func @transform_8(%arg0: i32) -> (i32, i32) {
    %c0_i32 = arith.constant 0 : i32
    %c0_i32_0 = arith.constant 0 : i32
    %c0_i32_1 = arith.constant 0 : i32
    return %c0_i32, %c0_i32_0 : i32, i32
  }
  func.func @transform_9(%arg0: i32) -> (i32, i32) {
    %c0_i32 = arith.constant 0 : i32
    %c0_i32_0 = arith.constant 0 : i32
    return %arg0, %c0_i32 : i32, i32
  }
}

</mosaic_0001>

<llo_original>
// kernel: tpu_custom_call.1
$region0: #{tpu_custom_call.1}
  #allocation0 [shape = 'u32[]', space=smem, size = 0x4, offset = 0x4, fixed_abs, tag = 'smem constant byte address 0x4 - core index']
  #allocation1 [shape = 'u32[144,128]{1,0:T(1,128)}', space=vmem, size = 0x12000, scoped, tag = 'internal scratch']
  %s0 = inlined_call_operand.hbm [shape: bf16[256,128], index: 0, kind: input, shape index: {}]
  %s1 = inlined_call_operand.hbm [shape: bf16[128,256], index: 1, kind: input, shape index: {}]
  %s2 = inlined_call_operand.vmem [shape: f32[1,256], index: 2, kind: input, shape index: {}]
  %s3 = inlined_call_operand.hbm [shape: bf16[256,128], index: 3, kind: input, shape index: {}]
  %s4 = inlined_call_operand.vmem [shape: f32[1,128], index: 4, kind: input, shape index: {}]
  %s5 = inlined_call_operand.hbm [shape: bf16[128,128], index: 5, kind: input, shape index: {}]
  %s6 = inlined_call_operand.vmem [shape: f32[1,128], index: 6, kind: input, shape index: {}]
  %s7 = inlined_call_operand.hbm [shape: bf16[128,128], index: 7, kind: input, shape index: {}]
  %s8 = inlined_call_operand.vmem [shape: f32[1,128], index: 8, kind: input, shape index: {}]
  %s9 = inlined_call_operand.hbm [shape: bf16[256,128], index: 9, kind: output, shape index: {}]
  %s10 = sld [smem:[#allocation0]]
  $region89: #{tpu_custom_call.1} parent=0
    _
  %s12 = ssub.s32 1, %s10
  %s13 = scalar_select 0, %s12, %s10
  $region1: #{tpu_custom_call.1} parent=0
    #allocation2 [shape = 'u8[65536]{0}', space=vmem, size = 0x10000, scoped, tag = 'input window, operand 0']
    #allocation3 [shape = 's32[2]{0}', space=sflag, size = 0x8, scoped, tag = 'scoped memory for tpu_custom_call.1']
    #allocation4 [shape = 's32[2]{0}', space=sflag, size = 0x8, scoped, tag = 'scoped memory for tpu_custom_call.1']
    #allocation5 [shape = 'u8[65536]{0}', space=vmem, size = 0x10000, scoped, tag = 'input window, operand 1, single buffered']
    #allocation6 [shape = 's32[1]{0}', space=sflag, size = 0x4, scoped, tag = 'scoped memory for tpu_custom_call.1']
    #allocation7 [shape = 'u8[65536]{0}', space=vmem, size = 0x10000, scoped, tag = 'input window, operand 3, single buffered']
    #allocation8 [shape = 'u8[32768]{0}', space=vmem, size = 0x8000, scoped, tag = 'input window, operand 5, single buffered']
    #allocation9 [shape = 's32[1]{0}', space=sflag, size = 0x4, scoped, tag = 'scoped memory for tpu_custom_call.1']
    #allocation10 [shape = 'u8[32768]{0}', space=vmem, size = 0x8000, scoped, tag = 'input window, operand 7, single buffered']
    #allocation11 [shape = 'u8[65536]{0}', space=vmem, size = 0x10000, scoped, tag = 'output window, operand 0']
    %14 = vsyncpa [#allocation3], 0
    %s15 = scalar_lea.sflag [#allocation3], 1
    %16 = vsyncpa %s15, 0
    %17 = vsyncpa [#allocation6], 0
    %18 = vsyncpa [#allocation9], 0
    %19 = vsyncpa [#allocation4], 0
    %s20 = scalar_lea.sflag [#allocation4], 1
    %21 = vsyncpa %s20, 0
    loop: start=0, step=1, limit=4
    $region2: #{tpu_custom_call.1} parent=1 // loop_pre_header
      _
    $region3: #{tpu_custom_call.1} parent=1 // loop_header
      %s23 = sphi 0, %s27
      %p24 = scmp.ge.s32.totalorder %s23, 4
      %s33 = sphi 0, %s35
      %s36 = sphi 0, %s33
      %s37 = sphi 0, %s36
      %s53 = sphi 0, %s37
      %s57 = sphi 0, %s57
      %s59 = sphi 0, %s57
      %s60 = sphi 0, %s59
      %s74 = sphi 0, %s60
      %s78 = sphi 0, %s78
      %s80 = sphi 0, %s78
      %s81 = sphi 0, %s80
      %s95 = sphi 0, %s81
      %s99 = sphi 0, %s99
      %s101 = sphi 0, %s99
      %s102 = sphi 0, %s101
      %s116 = sphi 0, %s102
      %s120 = sphi 0, %s120
      %s122 = sphi 0, %s120
      %s123 = sphi 0, %s122
      %s137 = sphi 0, %s123
      %s141 = sphi 0, %s141
      %s143 = sphi 0, %s141
      %s144 = sphi 0, %s143
      %s158 = sphi 0, %s144
      %s162 = sphi 0, %s162
      %s164 = sphi 0, %s162
      %s165 = sphi 0, %s164
      %s179 = sphi 0, %s165
      %s183 = sphi 0, %s183
      %s185 = sphi 0, %s183
      %s186 = sphi 0, %s185
      %s200 = sphi 0, %s186
      %s204 = sphi 0, %s204
      %s206 = sphi 0, %s204
      %s207 = sphi 0, %s206
      %s221 = sphi 0, %s207
      %s227 = sphi 0, %s229
      %s230 = sphi 0, %s227
      %s231 = sphi 0, %s230
      %s247 = sphi 0, %s231
    $region4: #{tpu_custom_call.1} parent=1 // loop_header_branch
      %26 = sbr.rel (%p24) target = $region8
    $region5: #{tpu_custom_call.1} parent=1 // loop_body
      %s28 = ssub.s32 %s23, 1
      %s29 = ssub.s32 %s23, 2
      %s30 = sadd.s32 %s23, 1
      %s31 = ssub.s32 %s23, %s30
      %p32 = scmp.eq.s32.totalorder %s31, 0
      %s34 = sadd.s32 %s33, 1
      %s35 = scalar_select %p32, %s33, %s34
      %p38 = pneg %p32
      %p39 = scmp.eq.s32.totalorder %s23, 1
      %p40 = por %p38, %p39
      %p41 = scmp.ne.s32.totalorder %s33, %s36
      %p42 = scmp.eq.s32.totalorder %s23, 0
      %p43 = por %p41, %p42
      %p44 = scmp.ne.s32.totalorder %s33, %s36
      %p45 = scmp.eq.s32.totalorder %s28, 1
      %p46 = por %p44, %p45
      %p47 = scmp.ne.s32.totalorder %s36, %s37
      %p48 = scmp.eq.s32.totalorder %s28, 0
      %p49 = por %p47, %p48
      %p50 = scmp.ne.s32.totalorder %s36, %s37
      %p51 = scmp.eq.s32.totalorder %s29, 1
      %p52 = por %p50, %p51
      %p54 = scmp.ne.s32.totalorder %s37, %s53
      %p55 = scmp.eq.s32.totalorder %s29, 0
      %p56 = por %p54, %p55
      %s58 = sadd.s32 %s57, 1
      %p61 = scmp.eq.s32.totalorder %s23, 1
      %p62 = scmp.ne.s32.totalorder %s57, %s59
      %p63 = scmp.eq.s32.totalorder %s23, 0
      %p64 = por %p62, %p63
      %p65 = scmp.ne.s32.totalorder %s57, %s59
      %p66 = scmp.eq.s32.totalorder %s28, 1
      %p67 = por %p65, %p66
      %p68 = scmp.ne.s32.totalorder %s59, %s60
      %p69 = scmp.eq.s32.totalorder %s28, 0
      %p70 = por %p68, %p69
      %p71 = scmp.ne.s32.totalorder %s59, %s60
      %p72 = scmp.eq.s32.totalorder %s29, 1
      %p73 = por %p71, %p72
      %p75 = scmp.ne.s32.totalorder %s60, %s74
      %p76 = scmp.eq.s32.totalorder %s29, 0
      %p77 = por %p75, %p76
      %s79 = sadd.s32 %s78, 1
      %p82 = scmp.eq.s32.totalorder %s23, 1
      %p83 = scmp.ne.s32.totalorder %s78, %s80
      %p84 = scmp.eq.s32.totalorder %s23, 0
      %p85 = por %p83, %p84
      %p86 = scmp.ne.s32.totalorder %s78, %s80
      %p87 = scmp.eq.s32.totalorder %s28, 1
      %p88 = por %p86, %p87
      %p89 = scmp.ne.s32.totalorder %s80, %s81
      %p90 = scmp.eq.s32.totalorder %s28, 0
      %p91 = por %p89, %p90
      %p92 = scmp.ne.s32.totalorder %s80, %s81
      %p93 = scmp.eq.s32.totalorder %s29, 1
      %p94 = por %p92, %p93
      %p96 = scmp.ne.s32.totalorder %s81, %s95
      %p97 = scmp.eq.s32.totalorder %s29, 0
      %p98 = por %p96, %p97
      %s100 = sadd.s32 %s99, 1
      %p103 = scmp.eq.s32.totalorder %s23, 1
      %p104 = scmp.ne.s32.totalorder %s99, %s101
      %p105 = scmp.eq.s32.totalorder %s23, 0
      %p106 = por %p104, %p105
      %p107 = scmp.ne.s32.totalorder %s99, %s101
      %p108 = scmp.eq.s32.totalorder %s28, 1
      %p109 = por %p107, %p108
      %p110 = scmp.ne.s32.totalorder %s101, %s102
      %p111 = scmp.eq.s32.totalorder %s28, 0
      %p112 = por %p110, %p111
      %p113 = scmp.ne.s32.totalorder %s101, %s102
      %p114 = scmp.eq.s32.totalorder %s29, 1
      %p115 = por %p113, %p114
      %p117 = scmp.ne.s32.totalorder %s102, %s116
      %p118 = scmp.eq.s32.totalorder %s29, 0
      %p119 = por %p117, %p118
      %s121 = sadd.s32 %s120, 1
      %p124 = scmp.eq.s32.totalorder %s23, 1
      %p125 = scmp.ne.s32.totalorder %s120, %s122
      %p126 = scmp.eq.s32.totalorder %s23, 0
      %p127 = por %p125, %p126
      %p128 = scmp.ne.s32.totalorder %s120, %s122
      %p129 = scmp.eq.s32.totalorder %s28, 1
      %p130 = por %p128, %p129
      %p131 = scmp.ne.s32.totalorder %s122, %s123
      %p132 = scmp.eq.s32.totalorder %s28, 0
      %p133 = por %p131, %p132
      %p134 = scmp.ne.s32.totalorder %s122, %s123
      %p135 = scmp.eq.s32.totalorder %s29, 1
      %p136 = por %p134, %p135
      %p138 = scmp.ne.s32.totalorder %s123, %s137
      %p139 = scmp.eq.s32.totalorder %s29, 0
      %p140 = por %p138, %p139
      %s142 = sadd.s32 %s141, 1
      %p145 = scmp.eq.s32.totalorder %s23, 1
      %p146 = scmp.ne.s32.totalorder %s141, %s143
      %p147 = scmp.eq.s32.totalorder %s23, 0
      %p148 = por %p146, %p147
      %p149 = scmp.ne.s32.totalorder %s141, %s143
      %p150 = scmp.eq.s32.totalorder %s28, 1
      %p151 = por %p149, %p150
      %p152 = scmp.ne.s32.totalorder %s143, %s144
      %p153 = scmp.eq.s32.totalorder %s28, 0
      %p154 = por %p152, %p153
      %p155 = scmp.ne.s32.totalorder %s143, %s144
      %p156 = scmp.eq.s32.totalorder %s29, 1
      %p157 = por %p155, %p156
      %p159 = scmp.ne.s32.totalorder %s144, %s158
      %p160 = scmp.eq.s32.totalorder %s29, 0
      %p161 = por %p159, %p160
      %s163 = sadd.s32 %s162, 1
      %p166 = scmp.eq.s32.totalorder %s23, 1
      %p167 = scmp.ne.s32.totalorder %s162, %s164
      %p168 = scmp.eq.s32.totalorder %s23, 0
      %p169 = por %p167, %p168
      %p170 = scmp.ne.s32.totalorder %s162, %s164
      %p171 = scmp.eq.s32.totalorder %s28, 1
      %p172 = por %p170, %p171
      %p173 = scmp.ne.s32.totalorder %s164, %s165
      %p174 = scmp.eq.s32.totalorder %s28, 0
      %p175 = por %p173, %p174
      %p176 = scmp.ne.s32.totalorder %s164, %s165
      %p177 = scmp.eq.s32.totalorder %s29, 1
      %p178 = por %p176, %p177
      %p180 = scmp.ne.s32.totalorder %s165, %s179
      %p181 = scmp.eq.s32.totalorder %s29, 0
      %p182 = por %p180, %p181
      %s184 = sadd.s32 %s183, 1
      %p187 = scmp.eq.s32.totalorder %s23, 1
      %p188 = scmp.ne.s32.totalorder %s183, %s185
      %p189 = scmp.eq.s32.totalorder %s23, 0
      %p190 = por %p188, %p189
      %p191 = scmp.ne.s32.totalorder %s183, %s185
      %p192 = scmp.eq.s32.totalorder %s28, 1
      %p193 = por %p191, %p192
      %p194 = scmp.ne.s32.totalorder %s185, %s186
      %p195 = scmp.eq.s32.totalorder %s28, 0
      %p196 = por %p194, %p195
      %p197 = scmp.ne.s32.totalorder %s185, %s186
      %p198 = scmp.eq.s32.totalorder %s29, 1
      %p199 = por %p197, %p198
      %p201 = scmp.ne.s32.totalorder %s186, %s200
      %p202 = scmp.eq.s32.totalorder %s29, 0
      %p203 = por %p201, %p202
      %s205 = sadd.s32 %s204, 1
      %p208 = scmp.eq.s32.totalorder %s23, 1
      %p209 = scmp.ne.s32.totalorder %s204, %s206
      %p210 = scmp.eq.s32.totalorder %s23, 0
      %p211 = por %p209, %p210
      %p212 = scmp.ne.s32.totalorder %s204, %s206
      %p213 = scmp.eq.s32.totalorder %s28, 1
      %p214 = por %p212, %p213
      %p215 = scmp.ne.s32.totalorder %s206, %s207
      %p216 = scmp.eq.s32.totalorder %s28, 0
      %p217 = por %p215, %p216
      %p218 = scmp.ne.s32.totalorder %s206, %s207
      %p219 = scmp.eq.s32.totalorder %s29, 1
      %p220 = por %p218, %p219
      %p222 = scmp.ne.s32.totalorder %s207, %s221
      %p223 = scmp.eq.s32.totalorder %s29, 0
      %p224 = por %p222, %p223
      %s225 = ssub.s32 %s23, %s30
      %p226 = scmp.eq.s32.totalorder %s225, 0
      %s228 = sadd.s32 %s227, 1
      %s229 = scalar_select %p226, %s227, %s228
      %p232 = pneg %p226
      %p233 = scmp.eq.s32.totalorder %s23, 1
      %p234 = por %p232, %p233
      %p235 = scmp.ne.s32.totalorder %s227, %s230
      %p236 = scmp.eq.s32.totalorder %s23, 0
      %p237 = por %p235, %p236
      %p238 = scmp.ne.s32.totalorder %s227, %s230
      %p239 = scmp.eq.s32.totalorder %s28, 1
      %p240 = por %p238, %p239
      %p241 = scmp.ne.s32.totalorder %s230, %s231
      %p242 = scmp.eq.s32.totalorder %s28, 0
      %p243 = por %p241, %p242
      %p244 = scmp.ne.s32.totalorder %s230, %s231
      %p245 = scmp.eq.s32.totalorder %s29, 1
      %p246 = por %p244, %p245
      %p248 = scmp.ne.s32.totalorder %s231, %s247
      %p249 = scmp.eq.s32.totalorder %s29, 0
      %p250 = por %p248, %p249
      %p251 = scmp.le.s32.totalorder 1, %s23
      %p252 = scmp.lt.s32.totalorder %s23, 3
      %p253 = pnand %p251, %p252
      %p254 = pneg %p253
      // Predicated region
      $region9: #{tpu_custom_call.1} parent=5 // pred_check
        _
      $region10: #{tpu_custom_call.1} parent=5 // pred_check_branch
        %256 = sbr.rel (%p253) target = $region12
      $region11: #{tpu_custom_call.1} parent=5 // pred_region
        %s257 = ssub.s32 %s23, 1
        // Predicated region
        $region13: #{tpu_custom_call.1} parent=11 // pred_check
          %p258 = pneg %p70
        $region14: #{tpu_custom_call.1} parent=11 // pred_check_branch
          %260 = sbr.rel (%p258) target = $region16
        $region15: #{tpu_custom_call.1} parent=11 // pred_region
          %s262 = ssub.s32 2048, 2048
          %263 = vsyncadd [#allocation6], %s262
          %s264 = sshll.u32 [#allocation5], 4
          %s265 = int_to_ptr.vmem [resolvable:$true] %s264
          %270 = dma.hbm_to_vmem [thread:$0]  %s1, 2048, %s265, [#allocation6], 128, 128, 8
        $region16: #{tpu_custom_call.1} parent=11 // pred_fallthru
          _
        // Predicated region
        $region17: #{tpu_custom_call.1} parent=11 // pred_check
          %p271 = pneg %p91
        $region18: #{tpu_custom_call.1} parent=11 // pred_check_branch
          %273 = sbr.rel (%p271) target = $region20
        $region19: #{tpu_custom_call.1} parent=11 // pred_region
          _
        $region20: #{tpu_custom_call.1} parent=11 // pred_fallthru
          _
        // Predicated region
        $region21: #{tpu_custom_call.1} parent=11 // pred_check
          %p274 = pneg %p112
        $region22: #{tpu_custom_call.1} parent=11 // pred_check_branch
          %276 = sbr.rel (%p274) target = $region24
        $region23: #{tpu_custom_call.1} parent=11 // pred_region
          %s278 = ssub.s32 2048, 2048
          %279 = vsyncadd [#allocation6], %s278
          %s280 = sshll.u32 [#allocation7], 4
          %s281 = int_to_ptr.vmem [resolvable:$true] %s280
          %286 = dma.hbm_to_vmem [thread:$0]  %s3, 2048, %s281, [#allocation6], 64, 64, 4
        $region24: #{tpu_custom_call.1} parent=11 // pred_fallthru
          _
        // Predicated region
        $region25: #{tpu_custom_call.1} parent=11 // pred_check
          %p287 = pneg %p133
        $region26: #{tpu_custom_call.1} parent=11 // pred_check_branch
          %289 = sbr.rel (%p287) target = $region28
        $region27: #{tpu_custom_call.1} parent=11 // pred_region
          _
        $region28: #{tpu_custom_call.1} parent=11 // pred_fallthru
          _
        // Predicated region
        $region29: #{tpu_custom_call.1} parent=11 // pred_check
          %p290 = pneg %p154
        $region30: #{tpu_custom_call.1} parent=11 // pred_check_branch
          %292 = sbr.rel (%p290) target = $region32
        $region31: #{tpu_custom_call.1} parent=11 // pred_region
          %s294 = ssub.s32 1024, 1024
          %295 = vsyncadd [#allocation9], %s294
          %s296 = sshll.u32 [#allocation8], 4
          %s297 = int_to_ptr.vmem [resolvable:$true] %s296
          %302 = dma.hbm_to_vmem [thread:$0]  %s5, 1024, %s297, [#allocation9], 64, 64, 4
        $region32: #{tpu_custom_call.1} parent=11 // pred_fallthru
          _
        // Predicated region
        $region33: #{tpu_custom_call.1} parent=11 // pred_check
          %p303 = pneg %p175
        $region34: #{tpu_custom_call.1} parent=11 // pred_check_branch
          %305 = sbr.rel (%p303) target = $region36
        $region35: #{tpu_custom_call.1} parent=11 // pred_region
          _
        $region36: #{tpu_custom_call.1} parent=11 // pred_fallthru
          _
        // Predicated region
        $region37: #{tpu_custom_call.1} parent=11 // pred_check
          %p306 = pneg %p196
        $region38: #{tpu_custom_call.1} parent=11 // pred_check_branch
          %308 = sbr.rel (%p306) target = $region40
        $region39: #{tpu_custom_call.1} parent=11 // pred_region
          %s310 = ssub.s32 1024, 1024
          %311 = vsyncadd [#allocation9], %s310
          %s312 = sshll.u32 [#allocation10], 4
          %s313 = int_to_ptr.vmem [resolvable:$true] %s312
          %318 = dma.hbm_to_vmem [thread:$0]  %s7, 1024, %s313, [#allocation9], 64, 64, 4
        $region40: #{tpu_custom_call.1} parent=11 // pred_fallthru
          _
        // Predicated region
        $region41: #{tpu_custom_call.1} parent=11 // pred_check
          %p319 = pneg %p217
        $region42: #{tpu_custom_call.1} parent=11 // pred_check_branch
          %321 = sbr.rel (%p319) target = $region44
        $region43: #{tpu_custom_call.1} parent=11 // pred_region
          _
        $region44: #{tpu_custom_call.1} parent=11 // pred_fallthru
          _
      $region12: #{tpu_custom_call.1} parent=5 // pred_fallthru
        _
      %p322 = scmp.lt.s32.totalorder %s23, 2
      // Predicated region
      $region45: #{tpu_custom_call.1} parent=5 // pred_check
        %p323 = pneg %p322
      $region46: #{tpu_custom_call.1} parent=5 // pred_check_branch
        %325 = sbr.rel (%p323) target = $region48
      $region47: #{tpu_custom_call.1} parent=5 // pred_region
        // Predicated region
        $region49: #{tpu_custom_call.1} parent=47 // pred_check
          %p326 = pneg %p43
        $region50: #{tpu_custom_call.1} parent=47 // pred_check_branch
          %328 = sbr.rel (%p326) target = $region52
        $region51: #{tpu_custom_call.1} parent=47 // pred_region
          %s329 = sand.u32 %s33, 1
          %s330 = scalar_lea.sflag [#allocation3], %s329
          %s331 = sand.u32 %s33, 1
          %s332 = smul.addr %s331, 64
          %s333 = scalar_lea.vmem [#allocation2], %s332
          %s334 = smul.u32 16, %s23
          %s336 = ssub.s32 1024, 1024
          %337 = vsyncadd %s330, %s336
          %s338 = smul.addr %s334, 64
          %s339 = scalar_lea.hbm %s0, %s338
          %s340 = sshll.u32 %s333, 4
          %s341 = int_to_ptr.vmem [resolvable:$true] %s340
          %346 = dma.hbm_to_vmem [thread:$0]  %s339, 1024, %s341, %s330, 64, 64, 4
        $region52: #{tpu_custom_call.1} parent=47 // pred_fallthru
          _
      $region48: #{tpu_custom_call.1} parent=5 // pred_fallthru
        _
      %p347 = scmp.le.s32.totalorder 1, %s23
      %p348 = scmp.lt.s32.totalorder %s23, 3
      %p349 = pnand %p347, %p348
      %p350 = pneg %p349
      // Predicated region
      $region53: #{tpu_custom_call.1} parent=5 // pred_check
        _
      $region54: #{tpu_custom_call.1} parent=5 // pred_check_branch
        %352 = sbr.rel (%p349) target = $region56
      $region55: #{tpu_custom_call.1} parent=5 // pred_region
        %s353 = ssub.s32 %s23, 1
        %s354 = sand.u32 %s36, 1
        %s355 = scalar_lea.sflag [#allocation3], %s354
        %s356 = sand.u32 %s36, 1
        %s357 = smul.addr %s356, 64
        %s358 = scalar_lea.vmem [#allocation2], %s357
        // Predicated region
        $region57: #{tpu_custom_call.1} parent=55 // pred_check
          %p359 = pneg %p49
        $region58: #{tpu_custom_call.1} parent=55 // pred_check_branch
          %361 = sbr.rel (%p359) target = $region60
        $region59: #{tpu_custom_call.1} parent=55 // pred_region
          %362 = dma.done %s355, 1024
        $region60: #{tpu_custom_call.1} parent=55 // pred_fallthru
          _
        // Predicated region
        $region61: #{tpu_custom_call.1} parent=55 // pred_check
          %p363 = pneg %p70
        $region62: #{tpu_custom_call.1} parent=55 // pred_check_branch
          %365 = sbr.rel (%p363) target = $region64
        $region63: #{tpu_custom_call.1} parent=55 // pred_region
          %366 = dma.done [#allocation6], 2048
        $region64: #{tpu_custom_call.1} parent=55 // pred_fallthru
          _
        // Predicated region
        $region65: #{tpu_custom_call.1} parent=55 // pred_check
          %p367 = pneg %p112
        $region66: #{tpu_custom_call.1} parent=55 // pred_check_branch
          %369 = sbr.rel (%p367) target = $region68
        $region67: #{tpu_custom_call.1} parent=55 // pred_region
          %370 = dma.done [#allocation6], 2048
        $region68: #{tpu_custom_call.1} parent=55 // pred_fallthru
          _
        // Predicated region
        $region69: #{tpu_custom_call.1} parent=55 // pred_check
          %p371 = pneg %p154
        $region70: #{tpu_custom_call.1} parent=55 // pred_check_branch
          %373 = sbr.rel (%p371) target = $region72
        $region71: #{tpu_custom_call.1} parent=55 // pred_region
          %374 = dma.done [#allocation9], 1024
        $region72: #{tpu_custom_call.1} parent=55 // pred_fallthru
          _
        // Predicated region
        $region73: #{tpu_custom_call.1} parent=55 // pred_check
          %p375 = pneg %p196
        $region74: #{tpu_custom_call.1} parent=55 // pred_check_branch
          %377 = sbr.rel (%p375) target = $region76
        $region75: #{tpu_custom_call.1} parent=55 // pred_region
          %378 = dma.done [#allocation9], 1024
        $region76: #{tpu_custom_call.1} parent=55 // pred_fallthru
          _
        %s379 = sand.u32 %s36, 1
        %s380 = scalar_lea.sflag [#allocation3], %s379
        %s381 = sand.u32 %s36, 1
        %s382 = smul.addr %s381, 64
        %s383 = scalar_lea.vmem [#allocation2], %s382
        %p384 = pneg %p49
        %p385 = pneg %p46
        %p386 = pneg %p70
        %p387 = pneg %p67
        %p388 = pneg %p91
        %p389 = pneg %p88
        %p390 = pneg %p112
        %p391 = pneg %p109
        %p392 = pneg %p133
        %p393 = pneg %p130
        %p394 = pneg %p154
        %p395 = pneg %p151
        %p396 = pneg %p175
        %p397 = pneg %p172
        %p398 = pneg %p196
        %p399 = pneg %p193
        %p400 = pneg %p217
        %p401 = pneg %p214
        %p402 = pneg %p243
        %p403 = pneg %p240
        %s404 = sand.u32 %s230, 1
        %s405 = scalar_lea.sflag [#allocation4], %s404
        %s406 = sand.u32 %s230, 1
        %s407 = smul.addr %s406, 64
        %s408 = scalar_lea.vmem [#allocation11], %s407
        %s409 = smul.u32 16, %s28
        %s410 = smul.u32 16, %s28
        %v412 = vld [vmem:[%s358] sm:$0xf]
        %v413 = vld [vmem:[%s358 + $0x4] sm:$0xf]
        %v414 = vld [vmem:[%s358 + $0x8] sm:$0xf]
        %v415 = vld [vmem:[%s358 + $0xc] sm:$0xf]
        %v416 = vld [vmem:[%s358 + $0x10] sm:$0xf]
        %v417 = vld [vmem:[%s358 + $0x14] sm:$0xf]
        %v418 = vld [vmem:[%s358 + $0x18] sm:$0xf]
        %v419 = vld [vmem:[%s358 + $0x1c] sm:$0xf]
        %v420 = vld [vmem:[%s358 + $0x20] sm:$0xf]
        %v421 = vld [vmem:[%s358 + $0x24] sm:$0xf]
        %v422 = vld [vmem:[%s358 + $0x28] sm:$0xf]
        %v423 = vld [vmem:[%s358 + $0x2c] sm:$0xf]
        %v424 = vld [vmem:[%s358 + $0x30] sm:$0xf]
        %v425 = vld [vmem:[%s358 + $0x34] sm:$0xf]
        %v426 = vld [vmem:[%s358 + $0x38] sm:$0xf]
        %v427 = vld [vmem:[%s358 + $0x3c] sm:$0xf]
        %v428 = vld [vmem:[#allocation5] sm:$0xff]
        %v429 = vld [vmem:[#allocation5 + $0x8] sm:$0xff]
        %v430 = vld [vmem:[#allocation5 + $0x10] sm:$0xff]
        %v431 = vld [vmem:[#allocation5 + $0x18] sm:$0xff]
        %v432 = vld [vmem:[#allocation5 + $0x20] sm:$0xff]
        %v433 = vld [vmem:[#allocation5 + $0x28] sm:$0xff]
        %v434 = vld [vmem:[#allocation5 + $0x30] sm:$0xff]
        %v435 = vld [vmem:[#allocation5 + $0x38] sm:$0xff]
        %v436 = vld [vmem:[#allocation5 + $0x40] sm:$0xff]
        %v437 = vld [vmem:[#allocation5 + $0x48] sm:$0xff]
        %v438 = vld [vmem:[#allocation5 + $0x50] sm:$0xff]
        %v439 = vld [vmem:[#allocation5 + $0x58] sm:$0xff]
        %v440 = vld [vmem:[#allocation5 + $0x60] sm:$0xff]
        %v441 = vld [vmem:[#allocation5 + $0x68] sm:$0xff]
        %v442 = vld [vmem:[#allocation5 + $0x70] sm:$0xff]
        %v443 = vld [vmem:[#allocation5 + $0x78] sm:$0xff]
        %v444 = vld [vmem:[%s2] sm:$0x3]
        %v446 = vlaneseq
        %v447 = vshrl.u32 %v446, 7
        %v448 = vsub.s32 0, %v447
        %v449 = vrot.slane %v444, %v448
        %v450 = vlaneseq
        %v451 = vshrl.u32 %v450, 7
        %v452 = vsub.s32 1, %v451
        %v453 = vrot.slane %v444, %v452
        %v472 = vunpack.c.l.b16 %v412
        %v473 = vunpack.c.l.b16 %v413
        %v474 = vunpack.c.l.b16 %v414
        %v475 = vunpack.c.l.b16 %v415
        %v476 = vunpack.c.l.b16 %v416
        %v477 = vunpack.c.l.b16 %v417
        %v478 = vunpack.c.l.b16 %v418
        %v479 = vunpack.c.l.b16 %v419
        %v480 = vunpack.c.l.b16 %v420
        %v481 = vunpack.c.l.b16 %v421
        %v482 = vunpack.c.l.b16 %v422
        %v483 = vunpack.c.l.b16 %v423
        %v484 = vunpack.c.l.b16 %v424
        %v485 = vunpack.c.l.b16 %v425
        %v486 = vunpack.c.l.b16 %v426
        %v487 = vunpack.c.l.b16 %v427
        %v488 = vpack.c.b16 %v473, %v472
        %v489 = vpack.c.b16 %v475, %v474
        %v490 = vpack.c.b16 %v477, %v476
        %v491 = vpack.c.b16 %v479, %v478
        %v492 = vpack.c.b16 %v481, %v480
        %v493 = vpack.c.b16 %v483, %v482
        %v494 = vpack.c.b16 %v485, %v484
        %v495 = vpack.c.b16 %v487, %v486
        %v520 = vunpack.c.l.b16 %v428
        %v521 = vunpack.c.h.b16 %v428
        %v522 = vunpack.c.l.b16 %v429
        %v523 = vunpack.c.h.b16 %v429
        %v524 = vunpack.c.l.b16 %v430
        %v525 = vunpack.c.h.b16 %v430
        %v526 = vunpack.c.l.b16 %v431
        %v527 = vunpack.c.h.b16 %v431
        %v528 = vunpack.c.l.b16 %v432
        %v529 = vunpack.c.h.b16 %v432
        %v530 = vunpack.c.l.b16 %v433
        %v531 = vunpack.c.h.b16 %v433
        %v532 = vunpack.c.l.b16 %v434
        %v533 = vunpack.c.h.b16 %v434
        %v534 = vunpack.c.l.b16 %v435
        %v535 = vunpack.c.h.b16 %v435
        %v536 = vunpack.c.l.b16 %v436
        %v537 = vunpack.c.h.b16 %v436
        %v538 = vunpack.c.l.b16 %v437
        %v539 = vunpack.c.h.b16 %v437
        %v540 = vunpack.c.l.b16 %v438
        %v541 = vunpack.c.h.b16 %v438
        %v542 = vunpack.c.l.b16 %v439
        %v543 = vunpack.c.h.b16 %v439
        %v544 = vunpack.c.l.b16 %v440
        %v545 = vunpack.c.h.b16 %v440
        %v546 = vunpack.c.l.b16 %v441
        %v547 = vunpack.c.h.b16 %v441
        %v548 = vunpack.c.l.b16 %v442
        %v549 = vunpack.c.h.b16 %v442
        %v550 = vunpack.c.l.b16 %v443
        %v551 = vunpack.c.h.b16 %v443
        %v552 = vpack.c.b16 %v522, %v520
        %v553 = vpack.c.b16 %v523, %v521
        %v554 = vpack.c.b16 %v526, %v524
        %v555 = vpack.c.b16 %v527, %v525
        %v556 = vpack.c.b16 %v530, %v528
        %v557 = vpack.c.b16 %v531, %v529
        %v558 = vpack.c.b16 %v534, %v532
        %v559 = vpack.c.b16 %v535, %v533
        %v560 = vpack.c.b16 %v538, %v536
        %v561 = vpack.c.b16 %v539, %v537
        %v562 = vpack.c.b16 %v542, %v540
        %v563 = vpack.c.b16 %v543, %v541
        %v564 = vpack.c.b16 %v546, %v544
        %v565 = vpack.c.b16 %v547, %v545
        %v566 = vpack.c.b16 %v550, %v548
        %v567 = vpack.c.b16 %v551, %v549
        %584 = vmatprep.subr.bf16.mxu0 %v553
        %585 = vmatpush1.bf16.msra.mxu0 %v552
        %586 = vmatprep.subr.bf16.mxu0 %v555
        %587 = vmatpush1.bf16.msra.mxu0 %v554
        %588 = vmatprep.subr.bf16.mxu0 %v557
        %589 = vmatpush1.bf16.msra.mxu0 %v556
        %590 = vmatprep.subr.bf16.mxu0 %v559
        %591 = vmatpush1.bf16.msra.mxu0 %v558
        %592 = vmatprep.subr.bf16.mxu0 %v561
        %593 = vmatpush1.bf16.msra.mxu0 %v560
        %594 = vmatprep.subr.bf16.mxu0 %v563
        %595 = vmatpush1.bf16.msra.mxu0 %v562
        %596 = vmatprep.subr.bf16.mxu0 %v565
        %597 = vmatpush1.bf16.msra.mxu0 %v564
        %598 = vmatprep.subr.bf16.mxu0 %v567
        %599 = vmatpush1.bf16.msra.mxu0 %v566
        %600 = vmatprep.subr.bf16.mxu0 0
        %601 = vmatpush1.bf16.msra.mxu0 0
        %602 = vmatprep.subr.bf16.mxu0 0
        %603 = vmatpush1.bf16.msra.mxu0 0
        %604 = vmatprep.subr.bf16.mxu0 0
        %605 = vmatpush1.bf16.msra.mxu0 0
        %606 = vmatprep.subr.bf16.mxu0 0
        %607 = vmatpush1.bf16.msra.mxu0 0
        %608 = vmatprep.subr.bf16.mxu0 0
        %609 = vmatpush1.bf16.msra.mxu0 0
        %610 = vmatprep.subr.bf16.mxu0 0
        %611 = vmatpush1.bf16.msra.mxu0 0
        %612 = vmatprep.subr.bf16.mxu0 0
        %613 = vmatpush1.bf16.msra.mxu0 0
        %614 = vmatprep.subr.bf16.mxu0 0
        %615 = vmatpush1.bf16.msra.mxu0 0
        %616 = vmatprep.mubr.bf16.mxu0 0
        %617 = vmatmul.mubr.bf16.gmra.mrb[0].mxu0 %v488
        %v618 = vpop.f32.mrb[0].mxu0
        %v619 = vadd.f32 %v449, %v618
        %v620 = vpop.f32.mrb[0].mxu0
        %v621 = vadd.f32 %v453, %v620
        %v622 = vpop.f32.mrb[0].mxu0
        %v623 = vadd.f32 %v449, %v622
        %v624 = vpop.f32.mrb[0].mxu0
        %v625 = vadd.f32 %v453, %v624
        %626 = vmatprep.mubr.bf16.mxu0 0
        %627 = vmatmul.mubr.bf16.gmra.mrb[0].mxu0 %v489
        %v628 = vpop.f32.mrb[0].mxu0
        %v629 = vadd.f32 %v449, %v628
        %v630 = vpop.f32.mrb[0].mxu0
        %v631 = vadd.f32 %v453, %v630
        %v632 = vpop.f32.mrb[0].mxu0
        %v633 = vadd.f32 %v449, %v632
        %v634 = vpop.f32.mrb[0].mxu0
        %v635 = vadd.f32 %v453, %v634
        %636 = vmatprep.mubr.bf16.mxu0 0
        %637 = vmatmul.mubr.bf16.gmra.mrb[0].mxu0 %v490
        %v638 = vpop.f32.mrb[0].mxu0
        %v639 = vadd.f32 %v449, %v638
        %v640 = vpop.f32.mrb[0].mxu0
        %v641 = vadd.f32 %v453, %v640
        %v642 = vpop.f32.mrb[0].mxu0
        %v643 = vadd.f32 %v449, %v642
        %v644 = vpop.f32.mrb[0].mxu0
        %v645 = vadd.f32 %v453, %v644
        %646 = vmatprep.mubr.bf16.mxu0 0
        %647 = vmatmul.mubr.bf16.gmra.mrb[0].mxu0 %v491
        %v648 = vpop.f32.mrb[0].mxu0
        %v649 = vadd.f32 %v449, %v648
        %v650 = vpop.f32.mrb[0].mxu0
        %v651 = vadd.f32 %v453, %v650
        %v652 = vpop.f32.mrb[0].mxu0
        %v653 = vadd.f32 %v449, %v652
        %v654 = vpop.f32.mrb[0].mxu0
        %v655 = vadd.f32 %v453, %v654
        %656 = vmatprep.mubr.bf16.mxu0 0
        %657 = vmatmul.mubr.bf16.gmra.mrb[0].mxu0 %v492
        %v658 = vpop.f32.mrb[0].mxu0
        %v659 = vadd.f32 %v449, %v658
        %v660 = vpop.f32.mrb[0].mxu0
        %v661 = vadd.f32 %v453, %v660
        %v662 = vpop.f32.mrb[0].mxu0
        %v663 = vadd.f32 %v449, %v662
        %v664 = vpop.f32.mrb[0].mxu0
        %v665 = vadd.f32 %v453, %v664
        %666 = vmatprep.mubr.bf16.mxu0 0
        %667 = vmatmul.mubr.bf16.gmra.mrb[0].mxu0 %v493
        %v668 = vpop.f32.mrb[0].mxu0
        %v669 = vadd.f32 %v449, %v668
        %v670 = vpop.f32.mrb[0].mxu0
        %v671 = vadd.f32 %v453, %v670
        %v672 = vpop.f32.mrb[0].mxu0
        %v673 = vadd.f32 %v449, %v672
        %v674 = vpop.f32.mrb[0].mxu0
        %v675 = vadd.f32 %v453, %v674
        %676 = vmatprep.mubr.bf16.mxu0 0
        %677 = vmatmul.mubr.bf16.gmra.mrb[0].mxu0 %v494
        %v678 = vpop.f32.mrb[0].mxu0
        %v679 = vadd.f32 %v449, %v678
        %v680 = vpop.f32.mrb[0].mxu0
        %v681 = vadd.f32 %v453, %v680
        %v682 = vpop.f32.mrb[0].mxu0
        %v683 = vadd.f32 %v449, %v682
        %v684 = vpop.f32.mrb[0].mxu0
        %v685 = vadd.f32 %v453, %v684
        %686 = vmatprep.mubr.bf16.mxu0 0
        %687 = vmatmul.mubr.bf16.gmra.mrb[0].mxu0 %v495
        %v688 = vpop.f32.mrb[0].mxu0
        %v689 = vadd.f32 %v449, %v688
        %v690 = vpop.f32.mrb[0].mxu0
        %v691 = vadd.f32 %v453, %v690
        %v692 = vpop.f32.mrb[0].mxu0
        %v693 = vadd.f32 %v449, %v692
        %v694 = vpop.f32.mrb[0].mxu0
        %v695 = vadd.f32 %v453, %v694
        %696 = vdwg.mxu0
        %v697 = vmax.f32 %v619, 0.0
        %v698 = vmax.f32 %v621, 0.0
        %v699 = vmax.f32 %v623, 0.0
        %v700 = vmax.f32 %v625, 0.0
        %v701 = vmax.f32 %v629, 0.0
        %v702 = vmax.f32 %v631, 0.0
        %v703 = vmax.f32 %v633, 0.0
        %v704 = vmax.f32 %v635, 0.0
        %v705 = vmax.f32 %v639, 0.0
        %v706 = vmax.f32 %v641, 0.0
        %v707 = vmax.f32 %v643, 0.0
        %v708 = vmax.f32 %v645, 0.0
        %v709 = vmax.f32 %v649, 0.0
        %v710 = vmax.f32 %v651, 0.0
        %v711 = vmax.f32 %v653, 0.0
        %v712 = vmax.f32 %v655, 0.0
        %v713 = vmax.f32 %v659, 0.0
        %v714 = vmax.f32 %v661, 0.0
        %v715 = vmax.f32 %v663, 0.0
        %v716 = vmax.f32 %v665, 0.0
        %v717 = vmax.f32 %v669, 0.0
        %v718 = vmax.f32 %v671, 0.0
        %v719 = vmax.f32 %v673, 0.0
        %v720 = vmax.f32 %v675, 0.0
        %v721 = vmax.f32 %v679, 0.0
        %v722 = vmax.f32 %v681, 0.0
        %v723 = vmax.f32 %v683, 0.0
        %v724 = vmax.f32 %v685, 0.0
        %v725 = vmax.f32 %v689, 0.0
        %v726 = vmax.f32 %v691, 0.0
        %v727 = vmax.f32 %v693, 0.0
        %v728 = vmax.f32 %v695, 0.0
        %v729 = vpack.c.bf16 %v699, %v697
        %v730 = vpack.c.bf16 %v700, %v698
        %v731 = vpack.c.bf16 %v703, %v701
        %v732 = vpack.c.bf16 %v704, %v702
        %v733 = vpack.c.bf16 %v707, %v705
        %v734 = vpack.c.bf16 %v708, %v706
        %v735 = vpack.c.bf16 %v711, %v709
        %v736 = vpack.c.bf16 %v712, %v710
        %v737 = vpack.c.bf16 %v715, %v713
        %v738 = vpack.c.bf16 %v716, %v714
        %v739 = vpack.c.bf16 %v719, %v717
        %v740 = vpack.c.bf16 %v720, %v718
        %v741 = vpack.c.bf16 %v723, %v721
        %v742 = vpack.c.bf16 %v724, %v722
        %v743 = vpack.c.bf16 %v727, %v725
        %v744 = vpack.c.bf16 %v728, %v726
        %v745 = vld [vmem:[#allocation7] sm:$0xf]
        %v746 = vld [vmem:[#allocation7 + $0x4] sm:$0xf]
        %v747 = vld [vmem:[#allocation7 + $0x8] sm:$0xf]
        %v748 = vld [vmem:[#allocation7 + $0xc] sm:$0xf]
        %v749 = vld [vmem:[#allocation7 + $0x10] sm:$0xf]
        %v750 = vld [vmem:[#allocation7 + $0x14] sm:$0xf]
        %v751 = vld [vmem:[#allocation7 + $0x18] sm:$0xf]
        %v752 = vld [vmem:[#allocation7 + $0x1c] sm:$0xf]
        %v753 = vld [vmem:[#allocation7 + $0x20] sm:$0xf]
        %v754 = vld [vmem:[#allocation7 + $0x24] sm:$0xf]
        %v755 = vld [vmem:[#allocation7 + $0x28] sm:$0xf]
        %v756 = vld [vmem:[#allocation7 + $0x2c] sm:$0xf]
        %v757 = vld [vmem:[#allocation7 + $0x30] sm:$0xf]
        %v758 = vld [vmem:[#allocation7 + $0x34] sm:$0xf]
        %v759 = vld [vmem:[#allocation7 + $0x38] sm:$0xf]
        %v760 = vld [vmem:[#allocation7 + $0x3c] sm:$0xf]
        %v761 = vld [vmem:[#allocation7 + $0x40] sm:$0xf]
        %v762 = vld [vmem:[#allocation7 + $0x44] sm:$0xf]
        %v763 = vld [vmem:[#allocation7 + $0x48] sm:$0xf]
        %v764 = vld [vmem:[#allocation7 + $0x4c] sm:$0xf]
        %v765 = vld [vmem:[#allocation7 + $0x50] sm:$0xf]
        %v766 = vld [vmem:[#allocation7 + $0x54] sm:$0xf]
        %v767 = vld [vmem:[#allocation7 + $0x58] sm:$0xf]
        %v768 = vld [vmem:[#allocation7 + $0x5c] sm:$0xf]
        %v769 = vld [vmem:[#allocation7 + $0x60] sm:$0xf]
        %v770 = vld [vmem:[#allocation7 + $0x64] sm:$0xf]
        %v771 = vld [vmem:[#allocation7 + $0x68] sm:$0xf]
        %v772 = vld [vmem:[#allocation7 + $0x6c] sm:$0xf]
        %v773 = vld [vmem:[#allocation7 + $0x70] sm:$0xf]
        %v774 = vld [vmem:[#allocation7 + $0x74] sm:$0xf]
        %v775 = vld [vmem:[#allocation7 + $0x78] sm:$0xf]
        %v776 = vld [vmem:[#allocation7 + $0x7c] sm:$0xf]
        %v777 = vld [vmem:[%s4] sm:$0x1]
        %v779 = vlaneseq
        %v780 = vshrl.u32 %v779, 7
        %v781 = vsub.s32 0, %v780
        %v782 = vrot.slane %v777, %v781
        %v816 = vunpack.c.l.b16 %v745
        %v817 = vunpack.c.l.b16 %v746
        %v818 = vunpack.c.l.b16 %v747
        %v819 = vunpack.c.l.b16 %v748
        %v820 = vunpack.c.l.b16 %v749
        %v821 = vunpack.c.l.b16 %v750
        %v822 = vunpack.c.l.b16 %v751
        %v823 = vunpack.c.l.b16 %v752
        %v824 = vunpack.c.l.b16 %v753
        %v825 = vunpack.c.l.b16 %v754
        %v826 = vunpack.c.l.b16 %v755
        %v827 = vunpack.c.l.b16 %v756
        %v828 = vunpack.c.l.b16 %v757
        %v829 = vunpack.c.l.b16 %v758
        %v830 = vunpack.c.l.b16 %v759
        %v831 = vunpack.c.l.b16 %v760
        %v832 = vunpack.c.l.b16 %v761
        %v833 = vunpack.c.l.b16 %v762
        %v834 = vunpack.c.l.b16 %v763
        %v835 = vunpack.c.l.b16 %v764
        %v836 = vunpack.c.l.b16 %v765
        %v837 = vunpack.c.l.b16 %v766
        %v838 = vunpack.c.l.b16 %v767
        %v839 = vunpack.c.l.b16 %v768
        %v840 = vunpack.c.l.b16 %v769
        %v841 = vunpack.c.l.b16 %v770
        %v842 = vunpack.c.l.b16 %v771
        %v843 = vunpack.c.l.b16 %v772
        %v844 = vunpack.c.l.b16 %v773
        %v845 = vunpack.c.l.b16 %v774
        %v846 = vunpack.c.l.b16 %v775
        %v847 = vunpack.c.l.b16 %v776
        %v848 = vpack.c.b16 %v817, %v816
        %v849 = vpack.c.b16 %v819, %v818
        %v850 = vpack.c.b16 %v821, %v820
        %v851 = vpack.c.b16 %v823, %v822
        %v852 = vpack.c.b16 %v825, %v824
        %v853 = vpack.c.b16 %v827, %v826
        %v854 = vpack.c.b16 %v829, %v828
        %v855 = vpack.c.b16 %v831, %v830
        %v856 = vpack.c.b16 %v833, %v832
        %v857 = vpack.c.b16 %v835, %v834
        %v858 = vpack.c.b16 %v837, %v836
        %v859 = vpack.c.b16 %v839, %v838
        %v860 = vpack.c.b16 %v841, %v840
        %v861 = vpack.c.b16 %v843, %v842
        %v862 = vpack.c.b16 %v845, %v844
        %v863 = vpack.c.b16 %v847, %v846
        %880 = vmatprep.subr.bf16.mxu0 0
        %881 = vmatpush1.bf16.msra.mxu0 %v848
        %882 = vmatprep.subr.bf16.mxu0 0
        %883 = vmatpush1.bf16.msra.mxu0 %v849
        %884 = vmatprep.subr.bf16.mxu0 0
        %885 = vmatpush1.bf16.msra.mxu0 %v850
        %886 = vmatprep.subr.bf16.mxu0 0
        %887 = vmatpush1.bf16.msra.mxu0 %v851
        %888 = vmatprep.subr.bf16.mxu0 0
        %889 = vmatpush1.bf16.msra.mxu0 %v852
        %890 = vmatprep.subr.bf16.mxu0 0
        %891 = vmatpush1.bf16.msra.mxu0 %v853
        %892 = vmatprep.subr.bf16.mxu0 0
        %893 = vmatpush1.bf16.msra.mxu0 %v854
        %894 = vmatprep.subr.bf16.mxu0 0
        %895 = vmatpush1.bf16.msra.mxu0 %v855
        %896 = vmatprep.subr.bf16.mxu0 0
        %897 = vmatpush1.bf16.msra.mxu0 %v856
        %898 = vmatprep.subr.bf16.mxu0 0
        %899 = vmatpush1.bf16.msra.mxu0 %v857
        %900 = vmatprep.subr.bf16.mxu0 0
        %901 = vmatpush1.bf16.msra.mxu0 %v858
        %902 = vmatprep.subr.bf16.mxu0 0
        %903 = vmatpush1.bf16.msra.mxu0 %v859
        %904 = vmatprep.subr.bf16.mxu0 0
        %905 = vmatpush1.bf16.msra.mxu0 %v860
        %906 = vmatprep.subr.bf16.mxu0 0
        %907 = vmatpush1.bf16.msra.mxu0 %v861
        %908 = vmatprep.subr.bf16.mxu0 0
        %909 = vmatpush1.bf16.msra.mxu0 %v862
        %910 = vmatprep.subr.bf16.mxu0 0
        %911 = vmatpush1.bf16.msra.mxu0 %v863
        %912 = vmatprep.mubr.bf16.mxu0 %v730
        %913 = vmatmul.mubr.bf16.gmra.mrb[0].mxu0 %v729
        %v914 = vpop.f32.mrb[0].mxu0
        %v915 = vadd.f32 %v782, %v914
        %v916 = vpop.f32.mrb[0].mxu0
        %v917 = vpop.f32.mrb[0].mxu0
        %v918 = vadd.f32 %v782, %v917
        %v919 = vpop.f32.mrb[0].mxu0
        %920 = vmatprep.mubr.bf16.mxu0 %v732
        %921 = vmatmul.mubr.bf16.gmra.mrb[0].mxu0 %v731
        %v922 = vpop.f32.mrb[0].mxu0
        %v923 = vadd.f32 %v782, %v922
        %v924 = vpop.f32.mrb[0].mxu0
        %v925 = vpop.f32.mrb[0].mxu0
        %v926 = vadd.f32 %v782, %v925
        %v927 = vpop.f32.mrb[0].mxu0
        %928 = vmatprep.mubr.bf16.mxu0 %v734
        %929 = vmatmul.mubr.bf16.gmra.mrb[0].mxu0 %v733
        %v930 = vpop.f32.mrb[0].mxu0
        %v931 = vadd.f32 %v782, %v930
        %v932 = vpop.f32.mrb[0].mxu0
        %v933 = vpop.f32.mrb[0].mxu0
        %v934 = vadd.f32 %v782, %v933
        %v935 = vpop.f32.mrb[0].mxu0
        %936 = vmatprep.mubr.bf16.mxu0 %v736
        %937 = vmatmul.mubr.bf16.gmra.mrb[0].mxu0 %v735
        %v938 = vpop.f32.mrb[0].mxu0
        %v939 = vadd.f32 %v782, %v938
        %v940 = vpop.f32.mrb[0].mxu0
        %v941 = vpop.f32.mrb[0].mxu0
        %v942 = vadd.f32 %v782, %v941
        %v943 = vpop.f32.mrb[0].mxu0
        %944 = vmatprep.mubr.bf16.mxu0 %v738
        %945 = vmatmul.mubr.bf16.gmra.mrb[0].mxu0 %v737
        %v946 = vpop.f32.mrb[0].mxu0
        %v947 = vadd.f32 %v782, %v946
        %v948 = vpop.f32.mrb[0].mxu0
        %v949 = vpop.f32.mrb[0].mxu0
        %v950 = vadd.f32 %v782, %v949
        %v951 = vpop.f32.mrb[0].mxu0
        %952 = vmatprep.mubr.bf16.mxu0 %v740
        %953 = vmatmul.mubr.bf16.gmra.mrb[0].mxu0 %v739
        %v954 = vpop.f32.mrb[0].mxu0
        %v955 = vadd.f32 %v782, %v954
        %v956 = vpop.f32.mrb[0].mxu0
        %v957 = vpop.f32.mrb[0].mxu0
        %v958 = vadd.f32 %v782, %v957
        %v959 = vpop.f32.mrb[0].mxu0
        %960 = vmatprep.mubr.bf16.mxu0 %v742
        %961 = vmatmul.mubr.bf16.gmra.mrb[0].mxu0 %v741
        %v962 = vpop.f32.mrb[0].mxu0
        %v963 = vadd.f32 %v782, %v962
        %v964 = vpop.f32.mrb[0].mxu0
        %v965 = vpop.f32.mrb[0].mxu0
        %v966 = vadd.f32 %v782, %v965
        %v967 = vpop.f32.mrb[0].mxu0
        %968 = vmatprep.mubr.bf16.mxu0 %v744
        %969 = vmatmul.mubr.bf16.gmra.mrb[0].mxu0 %v743
        %v970 = vpop.f32.mrb[0].mxu0
        %v971 = vadd.f32 %v782, %v970
        %v972 = vpop.f32.mrb[0].mxu0
        %v973 = vpop.f32.mrb[0].mxu0
        %v974 = vadd.f32 %v782, %v973
        %v975 = vpop.f32.mrb[0].mxu0
        %976 = vdwg.mxu0
        %v977 = vmax.f32 %v915, 0.0
        %v978 = vmax.f32 %v918, 0.0
        %v979 = vmax.f32 %v923, 0.0
        %v980 = vmax.f32 %v926, 0.0
        %v981 = vmax.f32 %v931, 0.0
        %v982 = vmax.f32 %v934, 0.0
        %v983 = vmax.f32 %v939, 0.0
        %v984 = vmax.f32 %v942, 0.0
        %v985 = vmax.f32 %v947, 0.0
        %v986 = vmax.f32 %v950, 0.0
        %v987 = vmax.f32 %v955, 0.0
        %v988 = vmax.f32 %v958, 0.0
        %v989 = vmax.f32 %v963, 0.0
        %v990 = vmax.f32 %v966, 0.0
        %v991 = vmax.f32 %v971, 0.0
        %v992 = vmax.f32 %v974, 0.0
        %v993 = vpack.c.bf16 %v978, %v977
        %v994 = vpack.c.bf16 %v980, %v979
        %v995 = vpack.c.bf16 %v982, %v981
        %v996 = vpack.c.bf16 %v984, %v983
        %v997 = vpack.c.bf16 %v986, %v985
        %v998 = vpack.c.bf16 %v988, %v987
        %v999 = vpack.c.bf16 %v990, %v989
        %v1000 = vpack.c.bf16 %v992, %v991
        %v1001 = vld [vmem:[#allocation8] sm:$0xf]
        %v1002 = vld [vmem:[#allocation8 + $0x4] sm:$0xf]
        %v1003 = vld [vmem:[#allocation8 + $0x8] sm:$0xf]
        %v1004 = vld [vmem:[#allocation8 + $0xc] sm:$0xf]
        %v1005 = vld [vmem:[#allocation8 + $0x10] sm:$0xf]
        %v1006 = vld [vmem:[#allocation8 + $0x14] sm:$0xf]
        %v1007 = vld [vmem:[#allocation8 + $0x18] sm:$0xf]
        %v1008 = vld [vmem:[#allocation8 + $0x1c] sm:$0xf]
        %v1009 = vld [vmem:[#allocation8 + $0x20] sm:$0xf]
        %v1010 = vld [vmem:[#allocation8 + $0x24] sm:$0xf]
        %v1011 = vld [vmem:[#allocation8 + $0x28] sm:$0xf]
        %v1012 = vld [vmem:[#allocation8 + $0x2c] sm:$0xf]
        %v1013 = vld [vmem:[#allocation8 + $0x30] sm:$0xf]
        %v1014 = vld [vmem:[#allocation8 + $0x34] sm:$0xf]
        %v1015 = vld [vmem:[#allocation8 + $0x38] sm:$0xf]
        %v1016 = vld [vmem:[#allocation8 + $0x3c] sm:$0xf]
        %v1017 = vld [vmem:[%s6] sm:$0x1]
        %v1019 = vlaneseq
        %v1020 = vshrl.u32 %v1019, 7
        %v1021 = vsub.s32 0, %v1020
        %v1022 = vrot.slane %v1017, %v1021
        %v1040 = vunpack.c.l.b16 %v1001
        %v1041 = vunpack.c.l.b16 %v1002
        %v1042 = vunpack.c.l.b16 %v1003
        %v1043 = vunpack.c.l.b16 %v1004
        %v1044 = vunpack.c.l.b16 %v1005
        %v1045 = vunpack.c.l.b16 %v1006
        %v1046 = vunpack.c.l.b16 %v1007
        %v1047 = vunpack.c.l.b16 %v1008
        %v1048 = vunpack.c.l.b16 %v1009
        %v1049 = vunpack.c.l.b16 %v1010
        %v1050 = vunpack.c.l.b16 %v1011
        %v1051 = vunpack.c.l.b16 %v1012
        %v1052 = vunpack.c.l.b16 %v1013
        %v1053 = vunpack.c.l.b16 %v1014
        %v1054 = vunpack.c.l.b16 %v1015
        %v1055 = vunpack.c.l.b16 %v1016
        %v1056 = vpack.c.b16 %v1041, %v1040
        %v1057 = vpack.c.b16 %v1043, %v1042
        %v1058 = vpack.c.b16 %v1045, %v1044
        %v1059 = vpack.c.b16 %v1047, %v1046
        %v1060 = vpack.c.b16 %v1049, %v1048
        %v1061 = vpack.c.b16 %v1051, %v1050
        %v1062 = vpack.c.b16 %v1053, %v1052
        %v1063 = vpack.c.b16 %v1055, %v1054
        %1072 = vmatprep.subr.bf16.mxu0 0
        %1073 = vmatpush1.bf16.msra.mxu0 %v1056
        %1074 = vmatprep.subr.bf16.mxu0 0
        %1075 = vmatpush1.bf16.msra.mxu0 %v1057
        %1076 = vmatprep.subr.bf16.mxu0 0
        %1077 = vmatpush1.bf16.msra.mxu0 %v1058
        %1078 = vmatprep.subr.bf16.mxu0 0
        %1079 = vmatpush1.bf16.msra.mxu0 %v1059
        %1080 = vmatprep.subr.bf16.mxu0 0
        %1081 = vmatpush1.bf16.msra.mxu0 %v1060
        %1082 = vmatprep.subr.bf16.mxu0 0
        %1083 = vmatpush1.bf16.msra.mxu0 %v1061
        %1084 = vmatprep.subr.bf16.mxu0 0
        %1085 = vmatpush1.bf16.msra.mxu0 %v1062
        %1086 = vmatprep.subr.bf16.mxu0 0
        %1087 = vmatpush1.bf16.msra.mxu0 %v1063
        %1088 = vmatprep.subr.bf16.mxu0 0
        %1089 = vmatpush1.bf16.msra.mxu0 0
        %1090 = vmatprep.subr.bf16.mxu0 0
        %1091 = vmatpush1.bf16.msra.mxu0 0
        %1092 = vmatprep.subr.bf16.mxu0 0
        %1093 = vmatpush1.bf16.msra.mxu0 0
        %1094 = vmatprep.subr.bf16.mxu0 0
        %1095 = vmatpush1.bf16.msra.mxu0 0
        %1096 = vmatprep.subr.bf16.mxu0 0
        %1097 = vmatpush1.bf16.msra.mxu0 0
        %1098 = vmatprep.subr.bf16.mxu0 0
        %1099 = vmatpush1.bf16.msra.mxu0 0
        %1100 = vmatprep.subr.bf16.mxu0 0
        %1101 = vmatpush1.bf16.msra.mxu0 0
        %1102 = vmatprep.subr.bf16.mxu0 0
        %1103 = vmatpush1.bf16.msra.mxu0 0
        %1104 = vmatprep.mubr.bf16.mxu0 0
        %1105 = vmatmul.mubr.bf16.gmra.mrb[0].mxu0 %v993
        %v1106 = vpop.f32.mrb[0].mxu0
        %v1107 = vadd.f32 %v1022, %v1106
        %v1108 = vpop.f32.mrb[0].mxu0
        %v1109 = vpop.f32.mrb[0].mxu0
        %v1110 = vadd.f32 %v1022, %v1109
        %v1111 = vpop.f32.mrb[0].mxu0
        %1112 = vmatprep.mubr.bf16.mxu0 0
        %1113 = vmatmul.mubr.bf16.gmra.mrb[0].mxu0 %v994
        %v1114 = vpop.f32.mrb[0].mxu0
        %v1115 = vadd.f32 %v1022, %v1114
        %v1116 = vpop.f32.mrb[0].mxu0
        %v1117 = vpop.f32.mrb[0].mxu0
        %v1118 = vadd.f32 %v1022, %v1117
        %v1119 = vpop.f32.mrb[0].mxu0
        %1120 = vmatprep.mubr.bf16.mxu0 0
        %1121 = vmatmul.mubr.bf16.gmra.mrb[0].mxu0 %v995
        %v1122 = vpop.f32.mrb[0].mxu0
        %v1123 = vadd.f32 %v1022, %v1122
        %v1124 = vpop.f32.mrb[0].mxu0
        %v1125 = vpop.f32.mrb[0].mxu0
        %v1126 = vadd.f32 %v1022, %v1125
        %v1127 = vpop.f32.mrb[0].mxu0
        %1128 = vmatprep.mubr.bf16.mxu0 0
        %1129 = vmatmul.mubr.bf16.gmra.mrb[0].mxu0 %v996
        %v1130 = vpop.f32.mrb[0].mxu0
        %v1131 = vadd.f32 %v1022, %v1130
        %v1132 = vpop.f32.mrb[0].mxu0
        %v1133 = vpop.f32.mrb[0].mxu0
        %v1134 = vadd.f32 %v1022, %v1133
        %v1135 = vpop.f32.mrb[0].mxu0
        %1136 = vmatprep.mubr.bf16.mxu0 0
        %1137 = vmatmul.mubr.bf16.gmra.mrb[0].mxu0 %v997
        %v1138 = vpop.f32.mrb[0].mxu0
        %v1139 = vadd.f32 %v1022, %v1138
        %v1140 = vpop.f32.mrb[0].mxu0
        %v1141 = vpop.f32.mrb[0].mxu0
        %v1142 = vadd.f32 %v1022, %v1141
        %v1143 = vpop.f32.mrb[0].mxu0
        %1144 = vmatprep.mubr.bf16.mxu0 0
        %1145 = vmatmul.mubr.bf16.gmra.mrb[0].mxu0 %v998
        %v1146 = vpop.f32.mrb[0].mxu0
        %v1147 = vadd.f32 %v1022, %v1146
        %v1148 = vpop.f32.mrb[0].mxu0
        %v1149 = vpop.f32.mrb[0].mxu0
        %v1150 = vadd.f32 %v1022, %v1149
        %v1151 = vpop.f32.mrb[0].mxu0
        %1152 = vmatprep.mubr.bf16.mxu0 0
        %1153 = vmatmul.mubr.bf16.gmra.mrb[0].mxu0 %v999
        %v1154 = vpop.f32.mrb[0].mxu0
        %v1155 = vadd.f32 %v1022, %v1154
        %v1156 = vpop.f32.mrb[0].mxu0
        %v1157 = vpop.f32.mrb[0].mxu0
        %v1158 = vadd.f32 %v1022, %v1157
        %v1159 = vpop.f32.mrb[0].mxu0
        %1160 = vmatprep.mubr.bf16.mxu0 0
        %1161 = vmatmul.mubr.bf16.gmra.mrb[0].mxu0 %v1000
        %v1162 = vpop.f32.mrb[0].mxu0
        %v1163 = vadd.f32 %v1022, %v1162
        %v1164 = vpop.f32.mrb[0].mxu0
        %v1165 = vpop.f32.mrb[0].mxu0
        %v1166 = vadd.f32 %v1022, %v1165
        %v1167 = vpop.f32.mrb[0].mxu0
        %1168 = vdwg.mxu0
        %v1169 = vmax.f32 %v1107, 0.0
        %v1170 = vmax.f32 %v1110, 0.0
        %v1171 = vmax.f32 %v1115, 0.0
        %v1172 = vmax.f32 %v1118, 0.0
        %v1173 = vmax.f32 %v1123, 0.0
        %v1174 = vmax.f32 %v1126, 0.0
        %v1175 = vmax.f32 %v1131, 0.0
        %v1176 = vmax.f32 %v1134, 0.0
        %v1177 = vmax.f32 %v1139, 0.0
        %v1178 = vmax.f32 %v1142, 0.0
        %v1179 = vmax.f32 %v1147, 0.0
        %v1180 = vmax.f32 %v1150, 0.0
        %v1181 = vmax.f32 %v1155, 0.0
        %v1182 = vmax.f32 %v1158, 0.0
        %v1183 = vmax.f32 %v1163, 0.0
        %v1184 = vmax.f32 %v1166, 0.0
        %v1185 = vpack.c.bf16 %v1170, %v1169
        %v1186 = vpack.c.bf16 %v1172, %v1171
        %v1187 = vpack.c.bf16 %v1174, %v1173
        %v1188 = vpack.c.bf16 %v1176, %v1175
        %v1189 = vpack.c.bf16 %v1178, %v1177
        %v1190 = vpack.c.bf16 %v1180, %v1179
        %v1191 = vpack.c.bf16 %v1182, %v1181
        %v1192 = vpack.c.bf16 %v1184, %v1183
        %v1193 = vld [vmem:[#allocation10] sm:$0xf]
        %v1194 = vld [vmem:[#allocation10 + $0x4] sm:$0xf]
        %v1195 = vld [vmem:[#allocation10 + $0x8] sm:$0xf]
        %v1196 = vld [vmem:[#allocation10 + $0xc] sm:$0xf]
        %v1197 = vld [vmem:[#allocation10 + $0x10] sm:$0xf]
        %v1198 = vld [vmem:[#allocation10 + $0x14] sm:$0xf]
        %v1199 = vld [vmem:[#allocation10 + $0x18] sm:$0xf]
        %v1200 = vld [vmem:[#allocation10 + $0x1c] sm:$0xf]
        %v1201 = vld [vmem:[#allocation10 + $0x20] sm:$0xf]
        %v1202 = vld [vmem:[#allocation10 + $0x24] sm:$0xf]
        %v1203 = vld [vmem:[#allocation10 + $0x28] sm:$0xf]
        %v1204 = vld [vmem:[#allocation10 + $0x2c] sm:$0xf]
        %v1205 = vld [vmem:[#allocation10 + $0x30] sm:$0xf]
        %v1206 = vld [vmem:[#allocation10 + $0x34] sm:$0xf]
        %v1207 = vld [vmem:[#allocation10 + $0x38] sm:$0xf]
        %v1208 = vld [vmem:[#allocation10 + $0x3c] sm:$0xf]
        %v1209 = vld [vmem:[%s8] sm:$0x1]
        %v1211 = vlaneseq
        %v1212 = vshrl.u32 %v1211, 7
        %v1213 = vsub.s32 0, %v1212
        %v1214 = vrot.slane %v1209, %v1213
        %v1232 = vunpack.c.l.b16 %v1193
        %v1233 = vunpack.c.l.b16 %v1194
        %v1234 = vunpack.c.l.b16 %v1195
        %v1235 = vunpack.c.l.b16 %v1196
        %v1236 = vunpack.c.l.b16 %v1197
        %v1237 = vunpack.c.l.b16 %v1198
        %v1238 = vunpack.c.l.b16 %v1199
        %v1239 = vunpack.c.l.b16 %v1200
        %v1240 = vunpack.c.l.b16 %v1201
        %v1241 = vunpack.c.l.b16 %v1202
        %v1242 = vunpack.c.l.b16 %v1203
        %v1243 = vunpack.c.l.b16 %v1204
        %v1244 = vunpack.c.l.b16 %v1205
        %v1245 = vunpack.c.l.b16 %v1206
        %v1246 = vunpack.c.l.b16 %v1207
        %v1247 = vunpack.c.l.b16 %v1208
        %v1248 = vpack.c.b16 %v1233, %v1232
        %v1249 = vpack.c.b16 %v1235, %v1234
        %v1250 = vpack.c.b16 %v1237, %v1236
        %v1251 = vpack.c.b16 %v1239, %v1238
        %v1252 = vpack.c.b16 %v1241, %v1240
        %v1253 = vpack.c.b16 %v1243, %v1242
        %v1254 = vpack.c.b16 %v1245, %v1244
        %v1255 = vpack.c.b16 %v1247, %v1246
        %1264 = vmatprep.subr.bf16.mxu0 0
        %1265 = vmatpush1.bf16.msra.mxu0 %v1248
        %1266 = vmatprep.subr.bf16.mxu0 0
        %1267 = vmatpush1.bf16.msra.mxu0 %v1249
        %1268 = vmatprep.subr.bf16.mxu0 0
        %1269 = vmatpush1.bf16.msra.mxu0 %v1250
        %1270 = vmatprep.subr.bf16.mxu0 0
        %1271 = vmatpush1.bf16.msra.mxu0 %v1251
        %1272 = vmatprep.subr.bf16.mxu0 0
        %1273 = vmatpush1.bf16.msra.mxu0 %v1252
        %1274 = vmatprep.subr.bf16.mxu0 0
        %1275 = vmatpush1.bf16.msra.mxu0 %v1253
        %1276 = vmatprep.subr.bf16.mxu0 0
        %1277 = vmatpush1.bf16.msra.mxu0 %v1254
        %1278 = vmatprep.subr.bf16.mxu0 0
        %1279 = vmatpush1.bf16.msra.mxu0 %v1255
        %1280 = vmatprep.subr.bf16.mxu0 0
        %1281 = vmatpush1.bf16.msra.mxu0 0
        %1282 = vmatprep.subr.bf16.mxu0 0
        %1283 = vmatpush1.bf16.msra.mxu0 0
        %1284 = vmatprep.subr.bf16.mxu0 0
        %1285 = vmatpush1.bf16.msra.mxu0 0
        %1286 = vmatprep.subr.bf16.mxu0 0
        %1287 = vmatpush1.bf16.msra.mxu0 0
        %1288 = vmatprep.subr.bf16.mxu0 0
        %1289 = vmatpush1.bf16.msra.mxu0 0
        %1290 = vmatprep.subr.bf16.mxu0 0
        %1291 = vmatpush1.bf16.msra.mxu0 0
        %1292 = vmatprep.subr.bf16.mxu0 0
        %1293 = vmatpush1.bf16.msra.mxu0 0
        %1294 = vmatprep.subr.bf16.mxu0 0
        %1295 = vmatpush1.bf16.msra.mxu0 0
        %1296 = vmatprep.mubr.bf16.mxu0 0
        %1297 = vmatmul.mubr.bf16.gmra.mrb[0].mxu0 %v1185
        %v1298 = vpop.f32.mrb[0].mxu0
        %v1299 = vadd.f32 %v1214, %v1298
        %v1300 = vpop.f32.mrb[0].mxu0
        %v1301 = vpop.f32.mrb[0].mxu0
        %v1302 = vadd.f32 %v1214, %v1301
        %v1303 = vpop.f32.mrb[0].mxu0
        %1304 = vmatprep.mubr.bf16.mxu0 0
        %1305 = vmatmul.mubr.bf16.gmra.mrb[0].mxu0 %v1186
        %v1306 = vpop.f32.mrb[0].mxu0
        %v1307 = vadd.f32 %v1214, %v1306
        %v1308 = vpop.f32.mrb[0].mxu0
        %v1309 = vpop.f32.mrb[0].mxu0
        %v1310 = vadd.f32 %v1214, %v1309
        %v1311 = vpop.f32.mrb[0].mxu0
        %1312 = vmatprep.mubr.bf16.mxu0 0
        %1313 = vmatmul.mubr.bf16.gmra.mrb[0].mxu0 %v1187
        %v1314 = vpop.f32.mrb[0].mxu0
        %v1315 = vadd.f32 %v1214, %v1314
        %v1316 = vpop.f32.mrb[0].mxu0
        %v1317 = vpop.f32.mrb[0].mxu0
        %v1318 = vadd.f32 %v1214, %v1317
        %v1319 = vpop.f32.mrb[0].mxu0
        %1320 = vmatprep.mubr.bf16.mxu0 0
        %1321 = vmatmul.mubr.bf16.gmra.mrb[0].mxu0 %v1188
        %v1322 = vpop.f32.mrb[0].mxu0
        %v1323 = vadd.f32 %v1214, %v1322
        %v1324 = vpop.f32.mrb[0].mxu0
        %v1325 = vpop.f32.mrb[0].mxu0
        %v1326 = vadd.f32 %v1214, %v1325
        %v1327 = vpop.f32.mrb[0].mxu0
        %1328 = vmatprep.mubr.bf16.mxu0 0
        %1329 = vmatmul.mubr.bf16.gmra.mrb[0].mxu0 %v1189
        %v1330 = vpop.f32.mrb[0].mxu0
        %v1331 = vadd.f32 %v1214, %v1330
        %v1332 = vpop.f32.mrb[0].mxu0
        %v1333 = vpop.f32.mrb[0].mxu0
        %v1334 = vadd.f32 %v1214, %v1333
        %v1335 = vpop.f32.mrb[0].mxu0
        %1336 = vmatprep.mubr.bf16.mxu0 0
        %1337 = vmatmul.mubr.bf16.gmra.mrb[0].mxu0 %v1190
        %v1338 = vpop.f32.mrb[0].mxu0
        %v1339 = vadd.f32 %v1214, %v1338
        %v1340 = vpop.f32.mrb[0].mxu0
        %v1341 = vpop.f32.mrb[0].mxu0
        %v1342 = vadd.f32 %v1214, %v1341
        %v1343 = vpop.f32.mrb[0].mxu0
        %1344 = vmatprep.mubr.bf16.mxu0 0
        %1345 = vmatmul.mubr.bf16.gmra.mrb[0].mxu0 %v1191
        %v1346 = vpop.f32.mrb[0].mxu0
        %v1347 = vadd.f32 %v1214, %v1346
        %v1348 = vpop.f32.mrb[0].mxu0
        %v1349 = vpop.f32.mrb[0].mxu0
        %v1350 = vadd.f32 %v1214, %v1349
        %v1351 = vpop.f32.mrb[0].mxu0
        %1352 = vmatprep.mubr.bf16.mxu0 0
        %1353 = vmatmul.mubr.bf16.gmra.mrb[0].mxu0 %v1192
        %v1354 = vpop.f32.mrb[0].mxu0
        %v1355 = vadd.f32 %v1214, %v1354
        %v1356 = vpop.f32.mrb[0].mxu0
        %v1357 = vpop.f32.mrb[0].mxu0
        %v1358 = vadd.f32 %v1214, %v1357
        %v1359 = vpop.f32.mrb[0].mxu0
        %1360 = vdwg.mxu0
        %v1361 = vpack.c.bf16 %v1302, %v1299
        %v1362 = vpack.c.bf16 %v1310, %v1307
        %v1363 = vpack.c.bf16 %v1318, %v1315
        %v1364 = vpack.c.bf16 %v1326, %v1323
        %v1365 = vpack.c.bf16 %v1334, %v1331
        %v1366 = vpack.c.bf16 %v1342, %v1339
        %v1367 = vpack.c.bf16 %v1350, %v1347
        %v1368 = vpack.c.bf16 %v1358, %v1355
        %v1377 = vunpack.c.l.b16 %v1361
        %v1378 = vunpack.c.h.b16 %v1361
        %v1379 = vunpack.c.l.b16 %v1362
        %v1380 = vunpack.c.h.b16 %v1362
        %v1381 = vunpack.c.l.b16 %v1363
        %v1382 = vunpack.c.h.b16 %v1363
        %v1383 = vunpack.c.l.b16 %v1364
        %v1384 = vunpack.c.h.b16 %v1364
        %v1385 = vunpack.c.l.b16 %v1365
        %v1386 = vunpack.c.h.b16 %v1365
        %v1387 = vunpack.c.l.b16 %v1366
        %v1388 = vunpack.c.h.b16 %v1366
        %v1389 = vunpack.c.l.b16 %v1367
        %v1390 = vunpack.c.h.b16 %v1367
        %v1391 = vunpack.c.l.b16 %v1368
        %v1392 = vunpack.c.h.b16 %v1368
        %v1393 = vpack.c.b16 %v1377, %v1377
        %v1394 = vpack.c.b16 %v1378, %v1378
        %v1395 = vpack.c.b16 %v1379, %v1379
        %v1396 = vpack.c.b16 %v1380, %v1380
        %v1397 = vpack.c.b16 %v1381, %v1381
        %v1398 = vpack.c.b16 %v1382, %v1382
        %v1399 = vpack.c.b16 %v1383, %v1383
        %v1400 = vpack.c.b16 %v1384, %v1384
        %v1401 = vpack.c.b16 %v1385, %v1385
        %v1402 = vpack.c.b16 %v1386, %v1386
        %v1403 = vpack.c.b16 %v1387, %v1387
        %v1404 = vpack.c.b16 %v1388, %v1388
        %v1405 = vpack.c.b16 %v1389, %v1389
        %v1406 = vpack.c.b16 %v1390, %v1390
        %v1407 = vpack.c.b16 %v1391, %v1391
        %v1408 = vpack.c.b16 %v1392, %v1392
        %1425 = vst [vmem:[%s408] sm:$0xf] %v1393
        %1426 = vst [vmem:[%s408 + $0x4] sm:$0xf] %v1394
        %1427 = vst [vmem:[%s408 + $0x8] sm:$0xf] %v1395
        %1428 = vst [vmem:[%s408 + $0xc] sm:$0xf] %v1396
        %1429 = vst [vmem:[%s408 + $0x10] sm:$0xf] %v1397
        %1430 = vst [vmem:[%s408 + $0x14] sm:$0xf] %v1398
        %1431 = vst [vmem:[%s408 + $0x18] sm:$0xf] %v1399
        %1432 = vst [vmem:[%s408 + $0x1c] sm:$0xf] %v1400
        %1433 = vst [vmem:[%s408 + $0x20] sm:$0xf] %v1401
        %1434 = vst [vmem:[%s408 + $0x24] sm:$0xf] %v1402
        %1435 = vst [vmem:[%s408 + $0x28] sm:$0xf] %v1403
        %1436 = vst [vmem:[%s408 + $0x2c] sm:$0xf] %v1404
        %1437 = vst [vmem:[%s408 + $0x30] sm:$0xf] %v1405
        %1438 = vst [vmem:[%s408 + $0x34] sm:$0xf] %v1406
        %1439 = vst [vmem:[%s408 + $0x38] sm:$0xf] %v1407
        %1440 = vst [vmem:[%s408 + $0x3c] sm:$0xf] %v1408
        %s1441 = sand.u32 %s230, 1
        %s1442 = scalar_lea.sflag [#allocation4], %s1441
        %s1443 = sand.u32 %s230, 1
        %s1444 = smul.addr %s1443, 64
        %s1445 = scalar_lea.vmem [#allocation11], %s1444
        // Predicated region
        $region77: #{tpu_custom_call.1} parent=55 // pred_check
          %p1446 = pneg %p240
        $region78: #{tpu_custom_call.1} parent=55 // pred_check_branch
          %1448 = sbr.rel (%p1446) target = $region80
        $region79: #{tpu_custom_call.1} parent=55 // pred_region
          %s1449 = smul.u32 16, %s28
          %s1451 = ssub.s32 1024, 1024
          %1452 = vsyncadd %s1442, %s1451
          %s1453 = smul.addr %s1449, 64
          %s1454 = scalar_lea.hbm %s9, %s1453
          %s1455 = sshll.u32 %s1445, 4
          %s1456 = int_to_ptr.vmem [resolvable:$true] %s1455
          %1461 = dma.vmem_to_hbm [thread:$0]  %s1456, 1024, %s1454, %s1442, 64, 64, 4
        $region80: #{tpu_custom_call.1} parent=55 // pred_fallthru
          _
      $region56: #{tpu_custom_call.1} parent=5 // pred_fallthru
        _
      %p1462 = scmp.le.s32.totalorder 2, %s23
      // Predicated region
      $region81: #{tpu_custom_call.1} parent=5 // pred_check
        %p1463 = pneg %p1462
      $region82: #{tpu_custom_call.1} parent=5 // pred_check_branch
        %1465 = sbr.rel (%p1463) target = $region84
      $region83: #{tpu_custom_call.1} parent=5 // pred_region
        %s1466 = ssub.s32 %s23, 2
        // Predicated region
        $region85: #{tpu_custom_call.1} parent=83 // pred_check
          %p1467 = pneg %p246
        $region86: #{tpu_custom_call.1} parent=83 // pred_check_branch
          %1469 = sbr.rel (%p1467) target = $region88
        $region87: #{tpu_custom_call.1} parent=83 // pred_region
          %s1470 = sand.u32 %s231, 1
          %s1471 = scalar_lea.sflag [#allocation4], %s1470
          %s1472 = sand.u32 %s231, 1
          %s1473 = smul.addr %s1472, 64
          %s1474 = scalar_lea.vmem [#allocation11], %s1473
          %1475 = dma.done %s1471, 1024
        $region88: #{tpu_custom_call.1} parent=83 // pred_fallthru
          _
      $region84: #{tpu_custom_call.1} parent=5 // pred_fallthru
        _
    $region6: #{tpu_custom_call.1} parent=1 // loop_footer
      %s27 = sadd.s32 1, %s23
    $region7: #{tpu_custom_call.1} parent=1 // loop_footer_branch
      %22 = sbr.rel target = $region3
    $region8: #{tpu_custom_call.1} parent=1 // loop_exit
      _
    %1476 = vsyncpa [#allocation3], 1
    %s1477 = scalar_lea.sflag [#allocation3], 1
    %1478 = vsyncpa %s1477, 1
    %1479 = vsyncpa [#allocation6], 1
    %1480 = vsyncpa [#allocation9], 1
    %1481 = vsyncpa [#allocation4], 1
    %s1482 = scalar_lea.sflag [#allocation4], 1
    %1483 = vsyncpa %s1482, 1

</llo_original>
